<compile_context>
chip_gen: v5e
topology: v5e:2x2
jax: 0.10.0
libtpu: 0.0.40
codegen_flags: <defaults>
</compile_context>

<pallas_src>
import functools

import jax
import jax.numpy as jnp
from jax import lax
from jax.experimental import pallas as pl
from jax.experimental.pallas import tpu as pltpu

BN_EPS = 1e-5
_TM = 512                              # M-tile (memory-bound passes like big tiles)
_VMEM_LIMIT_BYTES = 32 * 1024 * 1024   # explicit scoped-VMEM budget (safe on v5e/v6e/v7x)


def _round_up(x, m):
    return (x + m - 1) // m * m


def _pick_tile(total, candidates):
    for c in candidates:
        if total % c == 0:
            return c
    return total


# ---------------------------------------------------------------------------
# Pass 1: tiled matmul (bf16 MXU, f32 accumulation, K-reduction axis)
#         + global BN sum / sumsq accumulated across the M axis
# ---------------------------------------------------------------------------
def _matmul_stats_kernel(x_ref, w_ref, y_ref, sum_ref, sumsq_ref, acc_ref):
    m = pl.program_id(1)
    k = pl.program_id(2)

    @pl.when((m == 0) & (k == 0))
    def _init_stats():
        # Stat blocks keep the same block index for every (m, k) of a given c,
        # so they stay VMEM-resident and act as global accumulators.
        sum_ref[...] = jnp.zeros_like(sum_ref)
        sumsq_ref[...] = jnp.zeros_like(sumsq_ref)

    @pl.when(k == 0)
    def _init_acc():
        acc_ref[...] = jnp.zeros_like(acc_ref)

    acc_ref[...] += jnp.dot(x_ref[...], w_ref[...],
                            preferred_element_type=jnp.float32)     # (TM, TC) f32

    @pl.when(k == pl.num_programs(2) - 1)
    def _finalize():
        y = acc_ref[...]
        y_ref[...] = y.astype(y_ref.dtype)                          # bf16 intermediate
        # GLOBAL per-channel statistics (from the f32 accumulator, full precision).
        sum_ref[...] += jnp.sum(y, axis=0, keepdims=True)
        sumsq_ref[...] += jnp.sum(y * y, axis=0, keepdims=True)


def _matmul_stats(x_pad, w_pad, *, tm, tc, tk):
    mp, kp = x_pad.shape
    cp = w_pad.shape[1]
    grid = (cp // tc, mp // tm, kp // tk)   # c outer (parallel), m (stats acc), k (reduction)
    return pl.pallas_call(
        _matmul_stats_kernel,
        out_shape=(
            jax.ShapeDtypeStruct((mp, cp), jnp.bfloat16),   # Y intermediate (half HBM traffic)
            jax.ShapeDtypeStruct((1, cp), jnp.float32),     # per-channel sum
            jax.ShapeDtypeStruct((1, cp), jnp.float32),     # per-channel sum of squares
        ),
        grid_spec=pltpu.PrefetchScalarGridSpec(
            num_scalar_prefetch=0,
            grid=grid,
            in_specs=[
                pl.BlockSpec((tm, tk), lambda c, m, k: (m, k)),
                pl.BlockSpec((tk, tc), lambda c, m, k: (k, c)),
            ],
            out_specs=(
                pl.BlockSpec((tm, tc), lambda c, m, k: (m, c)),
                pl.BlockSpec((1, tc), lambda c, m, k: (0, c)),
                pl.BlockSpec((1, tc), lambda c, m, k: (0, c)),
            ),
            scratch_shapes=[pltpu.VMEM((tm, tc), jnp.float32)],
        ),
        compiler_params=pltpu.CompilerParams(
            dimension_semantics=("parallel", "arbitrary", "arbitrary"),
            vmem_limit_bytes=_VMEM_LIMIT_BYTES,
        ),
    )(x_pad, w_pad)


# ---------------------------------------------------------------------------
# Pass 2: memory-bound elementwise BatchNorm apply:  y * scale + shift
# ---------------------------------------------------------------------------
def _normalize_kernel(y_ref, scale_ref, shift_ref, o_ref):
    o_ref[...] = y_ref[...].astype(jnp.float32) * scale_ref[...] + shift_ref[...]


def _normalize(y, scale, shift, *, tm, tc):
    mp, cp = y.shape
    grid = (cp // tc, mp // tm)
    return pl.pallas_call(
        _normalize_kernel,
        out_shape=jax.ShapeDtypeStruct((mp, cp), jnp.float32),
        grid_spec=pltpu.PrefetchScalarGridSpec(
            num_scalar_prefetch=0,
            grid=grid,
            in_specs=[
                pl.BlockSpec((tm, tc), lambda c, m: (m, c)),
                pl.BlockSpec((1, tc), lambda c, m: (0, c)),
                pl.BlockSpec((1, tc), lambda c, m: (0, c)),
            ],
            out_specs=pl.BlockSpec((tm, tc), lambda c, m: (m, c)),
        ),
        compiler_params=pltpu.CompilerParams(
            dimension_semantics=("parallel", "parallel"),
            vmem_limit_bytes=_VMEM_LIMIT_BYTES,
        ),
    )(y, scale, shift)


# ---------------------------------------------------------------------------
# Plain-JAX glue
# ---------------------------------------------------------------------------
def _flatten_weight(weight, groups):
    # weight: (Cout, Cin//groups, kh, kw) -> block-diagonal (Cin*kh*kw, Cout)
    # (vectorized construction, no per-group scatter loop).
    # TODO(synk): for very large groups / depthwise, add a grid axis over groups with
    #             dense per-group (K/g)@(Cout/g) matmuls instead of the zero-padded
    #             block-diagonal weight.
    cout, cin_g, kh, kw = weight.shape
    cout_g = cout // groups
    kg = cin_g * kh * kw
    wg = jnp.transpose(weight.reshape(groups, cout_g, kg), (0, 2, 1))   # (G, Kg, Cg)
    eye = jnp.eye(groups, dtype=weight.dtype)                           # (G, G)
    w_bd = jnp.einsum("gkc,gh->gkhc", wg, eye)                          # (G, Kg, G, Cg)
    return w_bd.reshape(groups * kg, groups * cout_g)                   # (K, Cout)


@functools.partial(jax.jit, static_argnames=("stride", "padding", "groups"))
def conv_block_forward(x_nchw, weight, gamma, beta, *, stride, padding, groups):
    n, cin, h, w = x_nchw.shape
    cout, _, kh, kw = weight.shape

    # im2col patches, (N, Ho, Wo, Cin*kh*kw); feature dim is channel-major (cin, kh, kw),
    # matching the OIHW weight flattening.
    # TODO(synk): implicit-GEMM (halo-tile) patch extraction inside the kernel to avoid
    #             materializing the kh*kw-inflated im2col tensor in HBM.
    patches = lax.conv_general_dilated_patches(
        x_nchw, (kh, kw), (stride, stride),
        [(padding, padding), (padding, padding)],
        dimension_numbers=("NCHW", "OIHW", "NHWC"),
    )
    ho, wo, k = patches.shape[1], patches.shape[2], patches.shape[3]
    m = n * ho * wo
    patches = patches.reshape(m, k)

    w_mat = _flatten_weight(weight, groups)                 # (K, Cout)

    # Lane-dense, MXU-friendly padding + bf16 operands (f32 accumulation in-kernel).
    kp = _round_up(k, 128)
    cp = _round_up(cout, 128)
    tc = _pick_tile(cp, (256, 128))
    tk = _pick_tile(kp, (512, 256, 128))
    tm = min(_TM, _round_up(m, 8))
    mp = _round_up(m, tm)

    x_pad = jnp.pad(patches, ((0, mp - m), (0, kp - k))).astype(jnp.bfloat16)
    w_pad = jnp.pad(w_mat, ((0, kp - k), (0, cp - cout))).astype(jnp.bfloat16)

    y, ch_sum, ch_sumsq = _matmul_stats(x_pad, w_pad, tm=tm, tc=tc, tk=tk)

    # Per-channel BN parameters (tiny O(C) math). Zero-padded rows of X contribute
    # nothing to sum/sumsq, so divide by the real M. Padded channels get gamma=beta=0
    # and are sliced off below, so no NaN/garbage can leak into the result.
    mean = ch_sum[0] / m
    var = jnp.maximum(ch_sumsq[0] / m - mean * mean, 0.0)   # biased variance (f32 acc)
    inv_std = lax.rsqrt(var + BN_EPS)
    gamma_p = jnp.pad(gamma.astype(jnp.float32), (0, cp - cout))
    beta_p = jnp.pad(beta.astype(jnp.float32), (0, cp - cout))
    scale = (gamma_p * inv_std).reshape(1, cp)
    shift = (beta_p - mean * gamma_p * inv_std).reshape(1, cp)

    out = _normalize(y, scale, shift, tm=tm, tc=tc)         # (Mp, Cp) f32

    out = out[:m, :cout].reshape(n, ho, wo, cout)           # NHWC
    return jnp.transpose(out, (0, 3, 1, 2))                 # NCHW (module contract)


# ---------------------------------------------------------------------------
# Pure-JAX reference (sanity check)
# ---------------------------------------------------------------------------
def conv_block_reference(x_nchw, weight, gamma, beta, *, stride, padding, groups):
    y = lax.conv_general_dilated(
        x_nchw, weight,
        window_strides=(stride, stride),
        padding=[(padding, padding), (padding, padding)],
        dimension_numbers=("NCHW", "OIHW", "NCHW"),
        feature_group_count=groups,
    )
    mean = jnp.mean(y, axis=(0, 2, 3), keepdims=True)
    var = jnp.mean((y - mean) ** 2, axis=(0, 2, 3), keepdims=True)   # biased
    g = gamma.reshape(1, -1, 1, 1)
    b = beta.reshape(1, -1, 1, 1)
    return (y - mean) * lax.rsqrt(var + BN_EPS) * g + b


if __name__ == "__main__":
    # ConvBlock(in_channels=4, out_channels=8, kernel_size=3, stride=1,
    #           padding=1, groups=2, bias=False)
    N, CIN, H, W = 2, 4, 16, 16
    COUT, KH, KW = 8, 3, 3
    STRIDE, PAD, GROUPS = 1, 1, 2

    key = jax.random.PRNGKey(0)
    kx, kw_, kg, kb = jax.random.split(key, 4)
    x = jax.random.normal(kx, (N, CIN, H, W), dtype=jnp.float32)
    weight = jax.random.normal(kw_, (COUT, CIN // GROUPS, KH, KW), dtype=jnp.float32) * 0.1
    gamma = 1.0 + 0.1 * jax.random.normal(kg, (COUT,), dtype=jnp.float32)
    beta = 0.1 * jax.random.normal(kb, (COUT,), dtype=jnp.float32)

    out = conv_block_forward(x, weight, gamma, beta,
                             stride=STRIDE, padding=PAD, groups=GROUPS)
    out = jax.block_until_ready(out)

    ref = conv_block_reference(x, weight, gamma, beta,
                               stride=STRIDE, padding=PAD, groups=GROUPS)
    assert out.shape == (N, COUT, H, W)
    # bf16 MXU operands + bf16 intermediate -> loosened tolerance vs the f32 reference.
    max_err = float(jnp.max(jnp.abs(out - ref)))
    assert jnp.allclose(out, ref, atol=5e-2, rtol=5e-2), max_err
    print("KERNEL_OK")
</pallas_src>

<mosaic_0001>
module attributes {stable_mosaic.version = 11 : i64} {
  func.func @_matmul_stats_kernel(%arg0: i32, %arg1: i32, %arg2: i32, %arg3: memref<512x128xbf16, #tpu.memory_space<vmem>>, %arg4: memref<128x128xbf16, #tpu.memory_space<vmem>>, %arg5: memref<512x128xbf16, #tpu.memory_space<vmem>>, %arg6: memref<1x128xf32, #tpu.memory_space<vmem>>, %arg7: memref<1x128xf32, #tpu.memory_space<vmem>>, %arg8: memref<512x128xf32, #tpu.memory_space<vmem>>) attributes {dimension_semantics = [#tpu.dimension_semantics<parallel>, #tpu.dimension_semantics<arbitrary>, #tpu.dimension_semantics<arbitrary>], iteration_bounds = array<i64: 1, 1, 1>, scalar_prefetch = 0 : i64, scratch_operands = 1 : i64, tpu.core_type = #tpu.core_type<tc>, window_params = [{transform_indices = @transform_0, window_bounds = array<i64: 512, 128>}, {transform_indices = @transform_1, window_bounds = array<i64: 128, 128>}, {transform_indices = @transform_2, window_bounds = array<i64: 512, 128>}, {transform_indices = @transform_3, window_bounds = array<i64: 1, 128>}, {transform_indices = @transform_4, window_bounds = array<i64: 1, 128>}]} {
    %c0_i32 = arith.constant 0 : i32
    %0 = arith.cmpi eq, %arg1, %c0_i32 : i32
    %c0_i32_0 = arith.constant 0 : i32
    %1 = arith.cmpi eq, %arg2, %c0_i32_0 : i32
    %2 = arith.andi %0, %1 : i1
    %3 = arith.extui %2 : i1 to i32
    %c0_i32_1 = arith.constant 0 : i32
    %4 = arith.cmpi ne, %3, %c0_i32_1 : i32
    scf.if %4 {
      %cst_13 = arith.constant 0.000000e+00 : f32
      %17 = vector.broadcast %cst_13 : f32 to vector<1x128xf32>
      %c0_14 = arith.constant 0 : index
      %c0_15 = arith.constant 0 : index
      %18 = vector.load %arg6[%c0_14, %c0_15] : memref<1x128xf32, #tpu.memory_space<vmem>>, vector<1x128xf32>
      tpu.vector_store %arg6[%c0_14, %c0_15], %17 {strides = array<i32>} : memref<1x128xf32, #tpu.memory_space<vmem>>, vector<1x128xf32>,
      %cst_16 = arith.constant 0.000000e+00 : f32
      %19 = vector.broadcast %cst_16 : f32 to vector<1x128xf32>
      %c0_17 = arith.constant 0 : index
      %c0_18 = arith.constant 0 : index
      %20 = vector.load %arg7[%c0_17, %c0_18] : memref<1x128xf32, #tpu.memory_space<vmem>>, vector<1x128xf32>
      tpu.vector_store %arg7[%c0_17, %c0_18], %19 {strides = array<i32>} : memref<1x128xf32, #tpu.memory_space<vmem>>, vector<1x128xf32>,
    } else {
    }
    %c0_i32_2 = arith.constant 0 : i32
    %5 = arith.cmpi eq, %arg2, %c0_i32_2 : i32
    %6 = arith.extui %5 : i1 to i32
    %c0_i32_3 = arith.constant 0 : i32
    %7 = arith.cmpi ne, %6, %c0_i32_3 : i32
    scf.if %7 {
      %cst_13 = arith.constant 0.000000e+00 : f32
      %17 = vector.broadcast %cst_13 : f32 to vector<512x128xf32>
      %c0_14 = arith.constant 0 : index
      %c0_15 = arith.constant 0 : index
      %18 = vector.load %arg8[%c0_14, %c0_15] : memref<512x128xf32, #tpu.memory_space<vmem>>, vector<512x128xf32>
      tpu.vector_store %arg8[%c0_14, %c0_15], %17 {strides = array<i32>} : memref<512x128xf32, #tpu.memory_space<vmem>>, vector<512x128xf32>,
    } else {
    }
    %c0 = arith.constant 0 : index
    %c0_4 = arith.constant 0 : index
    %8 = vector.load %arg8[%c0, %c0_4] : memref<512x128xf32, #tpu.memory_space<vmem>>, vector<512x128xf32>
    %c0_5 = arith.constant 0 : index
    %c0_6 = arith.constant 0 : index
    %9 = vector.load %arg3[%c0_5, %c0_6] : memref<512x128xbf16, #tpu.memory_space<vmem>>, vector<512x128xbf16>
    %c0_7 = arith.constant 0 : index
    %c0_8 = arith.constant 0 : index
    %10 = vector.load %arg4[%c0_7, %c0_8] : memref<128x128xbf16, #tpu.memory_space<vmem>>, vector<128x128xbf16>
    %cst = arith.constant dense<0.000000e+00> : vector<512x128xf32>
    %11 = tpu.matmul %9, %10, %cst {dimension_numbers = #tpu.dot_dimension_numbers<[1], [0], [0], [1], [0, 0, 1, 1], [], []>} : vector<512x128xbf16>, vector<128x128xbf16>, vector<512x128xf32> -> vector<512x128xf32>
    %12 = arith.addf %8, %11 : vector<512x128xf32>
    %c0_9 = arith.constant 0 : index
    %c0_10 = arith.constant 0 : index
    %13 = vector.load %arg8[%c0_9, %c0_10] : memref<512x128xf32, #tpu.memory_space<vmem>>, vector<512x128xf32>
    tpu.vector_store %arg8[%c0_9, %c0_10], %12 {strides = array<i32>} : memref<512x128xf32, #tpu.memory_space<vmem>>, vector<512x128xf32>,
    %c0_i32_11 = arith.constant 0 : i32
    %14 = arith.cmpi eq, %arg2, %c0_i32_11 : i32
    %15 = arith.extui %14 : i1 to i32
    %c0_i32_12 = arith.constant 0 : i32
    %16 = arith.cmpi ne, %15, %c0_i32_12 : i32
    scf.if %16 {
      %c0_13 = arith.constant 0 : index
      %c0_14 = arith.constant 0 : index
      %17 = vector.load %arg8[%c0_13, %c0_14] : memref<512x128xf32, #tpu.memory_space<vmem>>, vector<512x128xf32>
      %18 = arith.truncf %17 : vector<512x128xf32> to vector<512x128xbf16>
      %c0_15 = arith.constant 0 : index
      %c0_16 = arith.constant 0 : index
      %19 = vector.load %arg5[%c0_15, %c0_16] : memref<512x128xbf16, #tpu.memory_space<vmem>>, vector<512x128xbf16>
      tpu.vector_store %arg5[%c0_15, %c0_16], %18 {strides = array<i32>} : memref<512x128xbf16, #tpu.memory_space<vmem>>, vector<512x128xbf16>,
      %c0_17 = arith.constant 0 : index
      %c0_18 = arith.constant 0 : index
      %20 = vector.load %arg6[%c0_17, %c0_18] : memref<1x128xf32, #tpu.memory_space<vmem>>, vector<1x128xf32>
      %cst_19 = arith.constant dense<0.000000e+00> : vector<128xf32>
      %21 = vector.multi_reduction <add>, %17, %cst_19 [0] : vector<512x128xf32> to vector<128xf32>
      %22 = vector.shape_cast %21 : vector<128xf32> to vector<1x128xf32>
      %23 = arith.addf %20, %22 : vector<1x128xf32>
      %c0_20 = arith.constant 0 : index
      %c0_21 = arith.constant 0 : index
      %24 = vector.load %arg6[%c0_20, %c0_21] : memref<1x128xf32, #tpu.memory_space<vmem>>, vector<1x128xf32>
      tpu.vector_store %arg6[%c0_20, %c0_21], %23 {strides = array<i32>} : memref<1x128xf32, #tpu.memory_space<vmem>>, vector<1x128xf32>,
      %c0_22 = arith.constant 0 : index
      %c0_23 = arith.constant 0 : index
      %25 = vector.load %arg7[%c0_22, %c0_23] : memref<1x128xf32, #tpu.memory_space<vmem>>, vector<1x128xf32>
      %26 = arith.mulf %17, %17 : vector<512x128xf32>
      %cst_24 = arith.constant dense<0.000000e+00> : vector<128xf32>
      %27 = vector.multi_reduction <add>, %26, %cst_24 [0] : vector<512x128xf32> to vector<128xf32>
      %28 = vector.shape_cast %27 : vector<128xf32> to vector<1x128xf32>
      %29 = arith.addf %25, %28 : vector<1x128xf32>
      %c0_25 = arith.constant 0 : index
      %c0_26 = arith.constant 0 : index
      %30 = vector.load %arg7[%c0_25, %c0_26] : memref<1x128xf32, #tpu.memory_space<vmem>>, vector<1x128xf32>
      tpu.vector_store %arg7[%c0_25, %c0_26], %29 {strides = array<i32>} : memref<1x128xf32, #tpu.memory_space<vmem>>, vector<1x128xf32>,
    } else {
    }
    return
  }
  func.func @transform_0(%arg0: i32, %arg1: i32, %arg2: i32) -> (i32, i32) {
    %c0_i32 = arith.constant 0 : i32
    return %arg1, %arg2 : i32, i32
  }
  func.func @transform_1(%arg0: i32, %arg1: i32, %arg2: i32) -> (i32, i32) {
    %c0_i32 = arith.constant 0 : i32
    return %arg2, %arg0 : i32, i32
  }
  func.func @transform_2(%arg0: i32, %arg1: i32, %arg2: i32) -> (i32, i32) {
    %c0_i32 = arith.constant 0 : i32
    return %arg1, %arg0 : i32, i32
  }
  func.func @transform_3(%arg0: i32, %arg1: i32, %arg2: i32) -> (i32, i32) {
    %c0_i32 = arith.constant 0 : i32
    %c0_i32_0 = arith.constant 0 : i32
    return %c0_i32, %arg0 : i32, i32
  }
  func.func @transform_4(%arg0: i32, %arg1: i32, %arg2: i32) -> (i32, i32) {
    %c0_i32 = arith.constant 0 : i32
    %c0_i32_0 = arith.constant 0 : i32
    return %c0_i32, %arg0 : i32, i32
  }
}

module attributes {stable_mosaic.version = 11 : i64} {
  func.func @_normalize_kernel(%arg0: i32, %arg1: i32, %arg2: memref<512x128xbf16, #tpu.memory_space<vmem>>, %arg3: memref<1x128xf32, #tpu.memory_space<vmem>>, %arg4: memref<1x128xf32, #tpu.memory_space<vmem>>, %arg5: memref<512x128xf32, #tpu.memory_space<vmem>>) attributes {dimension_semantics = [#tpu.dimension_semantics<parallel>, #tpu.dimension_semantics<parallel>], iteration_bounds = array<i64: 1, 1>, scalar_prefetch = 0 : i64, scratch_operands = 0 : i64, tpu.core_type = #tpu.core_type<tc>, window_params = [{transform_indices = @transform_0, window_bounds = array<i64: 512, 128>}, {transform_indices = @transform_1, window_bounds = array<i64: 1, 128>}, {transform_indices = @transform_2, window_bounds = array<i64: 1, 128>}, {transform_indices = @transform_3, window_bounds = array<i64: 512, 128>}]} {
    %c0 = arith.constant 0 : index
    %c0_0 = arith.constant 0 : index
    %0 = vector.load %arg2[%c0, %c0_0] : memref<512x128xbf16, #tpu.memory_space<vmem>>, vector<512x128xbf16>
    %1 = arith.extf %0 : vector<512x128xbf16> to vector<512x128xf32>
    %c0_1 = arith.constant 0 : index
    %c0_2 = arith.constant 0 : index
    %2 = vector.load %arg3[%c0_1, %c0_2] : memref<1x128xf32, #tpu.memory_space<vmem>>, vector<1x128xf32>
    %3 = vector.broadcast %2 : vector<1x128xf32> to vector<512x128xf32>
    %4 = arith.mulf %1, %3 : vector<512x128xf32>
    %c0_3 = arith.constant 0 : index
    %c0_4 = arith.constant 0 : index
    %5 = vector.load %arg4[%c0_3, %c0_4] : memref<1x128xf32, #tpu.memory_space<vmem>>, vector<1x128xf32>
    %6 = vector.broadcast %5 : vector<1x128xf32> to vector<512x128xf32>
    %7 = arith.addf %4, %6 : vector<512x128xf32>
    %c0_5 = arith.constant 0 : index
    %c0_6 = arith.constant 0 : index
    %8 = vector.load %arg5[%c0_5, %c0_6] : memref<512x128xf32, #tpu.memory_space<vmem>>, vector<512x128xf32>
    tpu.vector_store %arg5[%c0_5, %c0_6], %7 {strides = array<i32>} : memref<512x128xf32, #tpu.memory_space<vmem>>, vector<512x128xf32>,
    return
  }
  func.func @transform_0(%arg0: i32, %arg1: i32) -> (i32, i32) {
    %c0_i32 = arith.constant 0 : i32
    return %arg1, %arg0 : i32, i32
  }
  func.func @transform_1(%arg0: i32, %arg1: i32) -> (i32, i32) {
    %c0_i32 = arith.constant 0 : i32
    %c0_i32_0 = arith.constant 0 : i32
    return %c0_i32, %arg0 : i32, i32
  }
  func.func @transform_2(%arg0: i32, %arg1: i32) -> (i32, i32) {
    %c0_i32 = arith.constant 0 : i32
    %c0_i32_0 = arith.constant 0 : i32
    return %c0_i32, %arg0 : i32, i32
  }
  func.func @transform_3(%arg0: i32, %arg1: i32) -> (i32, i32) {
    %c0_i32 = arith.constant 0 : i32
    return %arg1, %arg0 : i32, i32
  }
}

</mosaic_0001>

<llo_original>
// kernel: conv_block_forward.3
$region0: #{conv_block_forward.3}
  #allocation0 [shape = 'u32[]', space=smem, size = 0x4, offset = 0x4, fixed_abs, tag = 'smem constant byte address 0x4 - core index']
  #allocation1 [shape = 'u32[72,128]{1,0:T(1,128)}', space=vmem, size = 0x9000, scoped, tag = 'internal scratch']
  %s0 = inlined_call_operand.vmem [shape: bf16[512,128], index: 0, kind: input, shape index: {}]
  %s1 = inlined_call_operand.vmem [shape: f32[1,128], index: 1, kind: input, shape index: {}]
  %s2 = inlined_call_operand.vmem [shape: f32[1,128], index: 2, kind: input, shape index: {}]
  %s3 = inlined_call_operand.vmem [shape: f32[512,128], index: 3, kind: output, shape index: {}]
  %s4 = sld [smem:[#allocation0]]
  $region22: #{conv_block_forward.3} parent=0
    _
  %s6 = ssub.s32 1, %s4
  %s7 = scalar_select 0, %s6, %s4
  // Predicated region
  $region2: #{conv_block_forward.3} parent=0 // pred_check
    _
  $region3: #{conv_block_forward.3} parent=0 // pred_check_branch
    %9 = sbr.rel (0) target = $region5
  $region4: #{conv_block_forward.3} parent=0 // pred_region
    _
  $region5: #{conv_block_forward.3} parent=0 // pred_fallthru
    _
  // Predicated region
  $region6: #{conv_block_forward.3} parent=0 // pred_check
    _
  $region7: #{conv_block_forward.3} parent=0 // pred_check_branch
    %11 = sbr.rel (0) target = $region9
  $region8: #{conv_block_forward.3} parent=0 // pred_region
    _
  $region9: #{conv_block_forward.3} parent=0 // pred_fallthru
    _
  // Predicated region
  $region10: #{conv_block_forward.3} parent=0 // pred_check
    _
  $region11: #{conv_block_forward.3} parent=0 // pred_check_branch
    %13 = sbr.rel (0) target = $region13
  $region12: #{conv_block_forward.3} parent=0 // pred_region
    _
  $region13: #{conv_block_forward.3} parent=0 // pred_fallthru
    _
  %v14 = vld [vmem:[%s0] sm:$0xf]
  %v15 = vld [vmem:[%s0 + $0x4] sm:$0xf]
  %v16 = vld [vmem:[%s0 + $0x8] sm:$0xf]
  %v17 = vld [vmem:[%s0 + $0xc] sm:$0xf]
  %v18 = vld [vmem:[%s0 + $0x10] sm:$0xf]
  %v19 = vld [vmem:[%s0 + $0x14] sm:$0xf]
  %v20 = vld [vmem:[%s0 + $0x18] sm:$0xf]
  %v21 = vld [vmem:[%s0 + $0x1c] sm:$0xf]
  %v22 = vld [vmem:[%s0 + $0x20] sm:$0xf]
  %v23 = vld [vmem:[%s0 + $0x24] sm:$0xf]
  %v24 = vld [vmem:[%s0 + $0x28] sm:$0xf]
  %v25 = vld [vmem:[%s0 + $0x2c] sm:$0xf]
  %v26 = vld [vmem:[%s0 + $0x30] sm:$0xf]
  %v27 = vld [vmem:[%s0 + $0x34] sm:$0xf]
  %v28 = vld [vmem:[%s0 + $0x38] sm:$0xf]
  %v29 = vld [vmem:[%s0 + $0x3c] sm:$0xf]
  %v30 = vld [vmem:[%s0 + $0x40] sm:$0xf]
  %v31 = vld [vmem:[%s0 + $0x44] sm:$0xf]
  %v32 = vld [vmem:[%s0 + $0x48] sm:$0xf]
  %v33 = vld [vmem:[%s0 + $0x4c] sm:$0xf]
  %v34 = vld [vmem:[%s0 + $0x50] sm:$0xf]
  %v35 = vld [vmem:[%s0 + $0x54] sm:$0xf]
  %v36 = vld [vmem:[%s0 + $0x58] sm:$0xf]
  %v37 = vld [vmem:[%s0 + $0x5c] sm:$0xf]
  %v38 = vld [vmem:[%s0 + $0x60] sm:$0xf]
  %v39 = vld [vmem:[%s0 + $0x64] sm:$0xf]
  %v40 = vld [vmem:[%s0 + $0x68] sm:$0xf]
  %v41 = vld [vmem:[%s0 + $0x6c] sm:$0xf]
  %v42 = vld [vmem:[%s0 + $0x70] sm:$0xf]
  %v43 = vld [vmem:[%s0 + $0x74] sm:$0xf]
  %v44 = vld [vmem:[%s0 + $0x78] sm:$0xf]
  %v45 = vld [vmem:[%s0 + $0x7c] sm:$0xf]
  %v46 = vld [vmem:[%s0 + $0x80] sm:$0xf]
  %v47 = vld [vmem:[%s0 + $0x84] sm:$0xf]
  %v48 = vld [vmem:[%s0 + $0x88] sm:$0xf]
  %v49 = vld [vmem:[%s0 + $0x8c] sm:$0xf]
  %v50 = vld [vmem:[%s0 + $0x90] sm:$0xf]
  %v51 = vld [vmem:[%s0 + $0x94] sm:$0xf]
  %v52 = vld [vmem:[%s0 + $0x98] sm:$0xf]
  %v53 = vld [vmem:[%s0 + $0x9c] sm:$0xf]
  %v54 = vld [vmem:[%s0 + $0xa0] sm:$0xf]
  %v55 = vld [vmem:[%s0 + $0xa4] sm:$0xf]
  %v56 = vld [vmem:[%s0 + $0xa8] sm:$0xf]
  %v57 = vld [vmem:[%s0 + $0xac] sm:$0xf]
  %v58 = vld [vmem:[%s0 + $0xb0] sm:$0xf]
  %v59 = vld [vmem:[%s0 + $0xb4] sm:$0xf]
  %v60 = vld [vmem:[%s0 + $0xb8] sm:$0xf]
  %v61 = vld [vmem:[%s0 + $0xbc] sm:$0xf]
  %v62 = vld [vmem:[%s0 + $0xc0] sm:$0xf]
  %v63 = vld [vmem:[%s0 + $0xc4] sm:$0xf]
  %v64 = vld [vmem:[%s0 + $0xc8] sm:$0xf]
  %v65 = vld [vmem:[%s0 + $0xcc] sm:$0xf]
  %v66 = vld [vmem:[%s0 + $0xd0] sm:$0xf]
  %v67 = vld [vmem:[%s0 + $0xd4] sm:$0xf]
  %v68 = vld [vmem:[%s0 + $0xd8] sm:$0xf]
  %v69 = vld [vmem:[%s0 + $0xdc] sm:$0xf]
  %v70 = vld [vmem:[%s0 + $0xe0] sm:$0xf]
  %v71 = vld [vmem:[%s0 + $0xe4] sm:$0xf]
  %v72 = vld [vmem:[%s0 + $0xe8] sm:$0xf]
  %v73 = vld [vmem:[%s0 + $0xec] sm:$0xf]
  %v74 = vld [vmem:[%s0 + $0xf0] sm:$0xf]
  %v75 = vld [vmem:[%s0 + $0xf4] sm:$0xf]
  %v76 = vld [vmem:[%s0 + $0xf8] sm:$0xf]
  %v77 = vld [vmem:[%s0 + $0xfc] sm:$0xf]
  %v78 = vunpack.c.l.bf16 %v14
  %v79 = vunpack.c.l.bf16 %v15
  %v80 = vunpack.c.l.bf16 %v16
  %v81 = vunpack.c.l.bf16 %v17
  %v82 = vunpack.c.l.bf16 %v18
  %v83 = vunpack.c.l.bf16 %v19
  %v84 = vunpack.c.l.bf16 %v20
  %v85 = vunpack.c.l.bf16 %v21
  %v86 = vunpack.c.l.bf16 %v22
  %v87 = vunpack.c.l.bf16 %v23
  %v88 = vunpack.c.l.bf16 %v24
  %v89 = vunpack.c.l.bf16 %v25
  %v90 = vunpack.c.l.bf16 %v26
  %v91 = vunpack.c.l.bf16 %v27
  %v92 = vunpack.c.l.bf16 %v28
  %v93 = vunpack.c.l.bf16 %v29
  %v94 = vunpack.c.l.bf16 %v30
  %v95 = vunpack.c.l.bf16 %v31
  %v96 = vunpack.c.l.bf16 %v32
  %v97 = vunpack.c.l.bf16 %v33
  %v98 = vunpack.c.l.bf16 %v34
  %v99 = vunpack.c.l.bf16 %v35
  %v100 = vunpack.c.l.bf16 %v36
  %v101 = vunpack.c.l.bf16 %v37
  %v102 = vunpack.c.l.bf16 %v38
  %v103 = vunpack.c.l.bf16 %v39
  %v104 = vunpack.c.l.bf16 %v40
  %v105 = vunpack.c.l.bf16 %v41
  %v106 = vunpack.c.l.bf16 %v42
  %v107 = vunpack.c.l.bf16 %v43
  %v108 = vunpack.c.l.bf16 %v44
  %v109 = vunpack.c.l.bf16 %v45
  %v110 = vunpack.c.l.bf16 %v46
  %v111 = vunpack.c.l.bf16 %v47
  %v112 = vunpack.c.l.bf16 %v48
  %v113 = vunpack.c.l.bf16 %v49
  %v114 = vunpack.c.l.bf16 %v50
  %v115 = vunpack.c.l.bf16 %v51
  %v116 = vunpack.c.l.bf16 %v52
  %v117 = vunpack.c.l.bf16 %v53
  %v118 = vunpack.c.l.bf16 %v54
  %v119 = vunpack.c.l.bf16 %v55
  %v120 = vunpack.c.l.bf16 %v56
  %v121 = vunpack.c.l.bf16 %v57
  %v122 = vunpack.c.l.bf16 %v58
  %v123 = vunpack.c.l.bf16 %v59
  %v124 = vunpack.c.l.bf16 %v60
  %v125 = vunpack.c.l.bf16 %v61
  %v126 = vunpack.c.l.bf16 %v62
  %v127 = vunpack.c.l.bf16 %v63
  %v128 = vunpack.c.l.bf16 %v64
  %v129 = vunpack.c.l.bf16 %v65
  %v130 = vunpack.c.l.bf16 %v66
  %v131 = vunpack.c.l.bf16 %v67
  %v132 = vunpack.c.l.bf16 %v68
  %v133 = vunpack.c.l.bf16 %v69
  %v134 = vunpack.c.l.bf16 %v70
  %v135 = vunpack.c.l.bf16 %v71
  %v136 = vunpack.c.l.bf16 %v72
  %v137 = vunpack.c.l.bf16 %v73
  %v138 = vunpack.c.l.bf16 %v74
  %v139 = vunpack.c.l.bf16 %v75
  %v140 = vunpack.c.l.bf16 %v76
  %v141 = vunpack.c.l.bf16 %v77
  %v142 = vld [vmem:[%s1] sm:$0x1]
  %v144 = vperm.slane %v142, 0
  %v146 = vmul.f32 %v78, %v144
  %v147 = vmul.f32 %v79, %v144
  %v148 = vmul.f32 %v80, %v144
  %v149 = vmul.f32 %v81, %v144
  %v150 = vmul.f32 %v82, %v144
  %v151 = vmul.f32 %v83, %v144
  %v152 = vmul.f32 %v84, %v144
  %v153 = vmul.f32 %v85, %v144
  %v154 = vmul.f32 %v86, %v144
  %v155 = vmul.f32 %v87, %v144
  %v156 = vmul.f32 %v88, %v144
  %v157 = vmul.f32 %v89, %v144
  %v158 = vmul.f32 %v90, %v144
  %v159 = vmul.f32 %v91, %v144
  %v160 = vmul.f32 %v92, %v144
  %v161 = vmul.f32 %v93, %v144
  %v162 = vmul.f32 %v94, %v144
  %v163 = vmul.f32 %v95, %v144
  %v164 = vmul.f32 %v96, %v144
  %v165 = vmul.f32 %v97, %v144
  %v166 = vmul.f32 %v98, %v144
  %v167 = vmul.f32 %v99, %v144
  %v168 = vmul.f32 %v100, %v144
  %v169 = vmul.f32 %v101, %v144
  %v170 = vmul.f32 %v102, %v144
  %v171 = vmul.f32 %v103, %v144
  %v172 = vmul.f32 %v104, %v144
  %v173 = vmul.f32 %v105, %v144
  %v174 = vmul.f32 %v106, %v144
  %v175 = vmul.f32 %v107, %v144
  %v176 = vmul.f32 %v108, %v144
  %v177 = vmul.f32 %v109, %v144
  %v178 = vmul.f32 %v110, %v144
  %v179 = vmul.f32 %v111, %v144
  %v180 = vmul.f32 %v112, %v144
  %v181 = vmul.f32 %v113, %v144
  %v182 = vmul.f32 %v114, %v144
  %v183 = vmul.f32 %v115, %v144
  %v184 = vmul.f32 %v116, %v144
  %v185 = vmul.f32 %v117, %v144
  %v186 = vmul.f32 %v118, %v144
  %v187 = vmul.f32 %v119, %v144
  %v188 = vmul.f32 %v120, %v144
  %v189 = vmul.f32 %v121, %v144
  %v190 = vmul.f32 %v122, %v144
  %v191 = vmul.f32 %v123, %v144
  %v192 = vmul.f32 %v124, %v144
  %v193 = vmul.f32 %v125, %v144
  %v194 = vmul.f32 %v126, %v144
  %v195 = vmul.f32 %v127, %v144
  %v196 = vmul.f32 %v128, %v144
  %v197 = vmul.f32 %v129, %v144
  %v198 = vmul.f32 %v130, %v144
  %v199 = vmul.f32 %v131, %v144
  %v200 = vmul.f32 %v132, %v144
  %v201 = vmul.f32 %v133, %v144
  %v202 = vmul.f32 %v134, %v144
  %v203 = vmul.f32 %v135, %v144
  %v204 = vmul.f32 %v136, %v144
  %v205 = vmul.f32 %v137, %v144
  %v206 = vmul.f32 %v138, %v144
  %v207 = vmul.f32 %v139, %v144
  %v208 = vmul.f32 %v140, %v144
  %v209 = vmul.f32 %v141, %v144
  %v210 = vld [vmem:[%s2] sm:$0x1]
  %v212 = vperm.slane %v210, 0
  %v214 = vadd.f32 %v146, %v212
  %v215 = vadd.f32 %v147, %v212
  %v216 = vadd.f32 %v148, %v212
  %v217 = vadd.f32 %v149, %v212
  %v218 = vadd.f32 %v150, %v212
  %v219 = vadd.f32 %v151, %v212
  %v220 = vadd.f32 %v152, %v212
  %v221 = vadd.f32 %v153, %v212
  %v222 = vadd.f32 %v154, %v212
  %v223 = vadd.f32 %v155, %v212
  %v224 = vadd.f32 %v156, %v212
  %v225 = vadd.f32 %v157, %v212
  %v226 = vadd.f32 %v158, %v212
  %v227 = vadd.f32 %v159, %v212
  %v228 = vadd.f32 %v160, %v212
  %v229 = vadd.f32 %v161, %v212
  %v230 = vadd.f32 %v162, %v212
  %v231 = vadd.f32 %v163, %v212
  %v232 = vadd.f32 %v164, %v212
  %v233 = vadd.f32 %v165, %v212
  %v234 = vadd.f32 %v166, %v212
  %v235 = vadd.f32 %v167, %v212
  %v236 = vadd.f32 %v168, %v212
  %v237 = vadd.f32 %v169, %v212
  %v238 = vadd.f32 %v170, %v212
  %v239 = vadd.f32 %v171, %v212
  %v240 = vadd.f32 %v172, %v212
  %v241 = vadd.f32 %v173, %v212
  %v242 = vadd.f32 %v174, %v212
  %v243 = vadd.f32 %v175, %v212
  %v244 = vadd.f32 %v176, %v212
  %v245 = vadd.f32 %v177, %v212
  %v246 = vadd.f32 %v178, %v212
  %v247 = vadd.f32 %v179, %v212
  %v248 = vadd.f32 %v180, %v212
  %v249 = vadd.f32 %v181, %v212
  %v250 = vadd.f32 %v182, %v212
  %v251 = vadd.f32 %v183, %v212
  %v252 = vadd.f32 %v184, %v212
  %v253 = vadd.f32 %v185, %v212
  %v254 = vadd.f32 %v186, %v212
  %v255 = vadd.f32 %v187, %v212
  %v256 = vadd.f32 %v188, %v212
  %v257 = vadd.f32 %v189, %v212
  %v258 = vadd.f32 %v190, %v212
  %v259 = vadd.f32 %v191, %v212
  %v260 = vadd.f32 %v192, %v212
  %v261 = vadd.f32 %v193, %v212
  %v262 = vadd.f32 %v194, %v212
  %v263 = vadd.f32 %v195, %v212
  %v264 = vadd.f32 %v196, %v212
  %v265 = vadd.f32 %v197, %v212
  %v266 = vadd.f32 %v198, %v212
  %v267 = vadd.f32 %v199, %v212
  %v268 = vadd.f32 %v200, %v212
  %v269 = vadd.f32 %v201, %v212
  %v270 = vadd.f32 %v202, %v212
  %v271 = vadd.f32 %v203, %v212
  %v272 = vadd.f32 %v204, %v212
  %v273 = vadd.f32 %v205, %v212
  %v274 = vadd.f32 %v206, %v212
  %v275 = vadd.f32 %v207, %v212
  %v276 = vadd.f32 %v208, %v212
  %v277 = vadd.f32 %v209, %v212
  %278 = vst [vmem:[%s3] sm:$0xff] %v214
  %279 = vst [vmem:[%s3 + $0x8] sm:$0xff] %v215
  %280 = vst [vmem:[%s3 + $0x10] sm:$0xff] %v216
  %281 = vst [vmem:[%s3 + $0x18] sm:$0xff] %v217
  %282 = vst [vmem:[%s3 + $0x20] sm:$0xff] %v218
  %283 = vst [vmem:[%s3 + $0x28] sm:$0xff] %v219
  %284 = vst [vmem:[%s3 + $0x30] sm:$0xff] %v220
  %285 = vst [vmem:[%s3 + $0x38] sm:$0xff] %v221
  %286 = vst [vmem:[%s3 + $0x40] sm:$0xff] %v222
  %287 = vst [vmem:[%s3 + $0x48] sm:$0xff] %v223
  %288 = vst [vmem:[%s3 + $0x50] sm:$0xff] %v224
  %289 = vst [vmem:[%s3 + $0x58] sm:$0xff] %v225
  %290 = vst [vmem:[%s3 + $0x60] sm:$0xff] %v226
  %291 = vst [vmem:[%s3 + $0x68] sm:$0xff] %v227
  %292 = vst [vmem:[%s3 + $0x70] sm:$0xff] %v228
  %293 = vst [vmem:[%s3 + $0x78] sm:$0xff] %v229
  %294 = vst [vmem:[%s3 + $0x80] sm:$0xff] %v230
  %295 = vst [vmem:[%s3 + $0x88] sm:$0xff] %v231
  %296 = vst [vmem:[%s3 + $0x90] sm:$0xff] %v232
  %297 = vst [vmem:[%s3 + $0x98] sm:$0xff] %v233
  %298 = vst [vmem:[%s3 + $0xa0] sm:$0xff] %v234
  %299 = vst [vmem:[%s3 + $0xa8] sm:$0xff] %v235
  %300 = vst [vmem:[%s3 + $0xb0] sm:$0xff] %v236
  %301 = vst [vmem:[%s3 + $0xb8] sm:$0xff] %v237
  %302 = vst [vmem:[%s3 + $0xc0] sm:$0xff] %v238
  %303 = vst [vmem:[%s3 + $0xc8] sm:$0xff] %v239
  %304 = vst [vmem:[%s3 + $0xd0] sm:$0xff] %v240
  %305 = vst [vmem:[%s3 + $0xd8] sm:$0xff] %v241
  %306 = vst [vmem:[%s3 + $0xe0] sm:$0xff] %v242
  %307 = vst [vmem:[%s3 + $0xe8] sm:$0xff] %v243
  %308 = vst [vmem:[%s3 + $0xf0] sm:$0xff] %v244
  %309 = vst [vmem:[%s3 + $0xf8] sm:$0xff] %v245
  %310 = vst [vmem:[%s3 + $0x100] sm:$0xff] %v246
  %311 = vst [vmem:[%s3 + $0x108] sm:$0xff] %v247
  %312 = vst [vmem:[%s3 + $0x110] sm:$0xff] %v248
  %313 = vst [vmem:[%s3 + $0x118] sm:$0xff] %v249
  %314 = vst [vmem:[%s3 + $0x120] sm:$0xff] %v250
  %315 = vst [vmem:[%s3 + $0x128] sm:$0xff] %v251
  %316 = vst [vmem:[%s3 + $0x130] sm:$0xff] %v252
  %317 = vst [vmem:[%s3 + $0x138] sm:$0xff] %v253
  %318 = vst [vmem:[%s3 + $0x140] sm:$0xff] %v254
  %319 = vst [vmem:[%s3 + $0x148] sm:$0xff] %v255
  %320 = vst [vmem:[%s3 + $0x150] sm:$0xff] %v256
  %321 = vst [vmem:[%s3 + $0x158] sm:$0xff] %v257
  %322 = vst [vmem:[%s3 + $0x160] sm:$0xff] %v258
  %323 = vst [vmem:[%s3 + $0x168] sm:$0xff] %v259
  %324 = vst [vmem:[%s3 + $0x170] sm:$0xff] %v260
  %325 = vst [vmem:[%s3 + $0x178] sm:$0xff] %v261
  %326 = vst [vmem:[%s3 + $0x180] sm:$0xff] %v262
  %327 = vst [vmem:[%s3 + $0x188] sm:$0xff] %v263
  %328 = vst [vmem:[%s3 + $0x190] sm:$0xff] %v264
  %329 = vst [vmem:[%s3 + $0x198] sm:$0xff] %v265
  %330 = vst [vmem:[%s3 + $0x1a0] sm:$0xff] %v266
  %331 = vst [vmem:[%s3 + $0x1a8] sm:$0xff] %v267
  %332 = vst [vmem:[%s3 + $0x1b0] sm:$0xff] %v268
  %333 = vst [vmem:[%s3 + $0x1b8] sm:$0xff] %v269
  %334 = vst [vmem:[%s3 + $0x1c0] sm:$0xff] %v270
  %335 = vst [vmem:[%s3 + $0x1c8] sm:$0xff] %v271
  %336 = vst [vmem:[%s3 + $0x1d0] sm:$0xff] %v272
  %337 = vst [vmem:[%s3 + $0x1d8] sm:$0xff] %v273
  %338 = vst [vmem:[%s3 + $0x1e0] sm:$0xff] %v274
  %339 = vst [vmem:[%s3 + $0x1e8] sm:$0xff] %v275
  %340 = vst [vmem:[%s3 + $0x1f0] sm:$0xff] %v276
  %341 = vst [vmem:[%s3 + $0x1f8] sm:$0xff] %v277
  // Predicated region
  $region14: #{conv_block_forward.3} parent=0 // pred_check
    _
  $region15: #{conv_block_forward.3} parent=0 // pred_check_branch
    %343 = sbr.rel (0) target = $region17
  $region16: #{conv_block_forward.3} parent=0 // pred_region
    _
  $region17: #{conv_block_forward.3} parent=0 // pred_fallthru
    _
  // Predicated region
  $region18: #{conv_block_forward.3} parent=0 // pred_check
    _
  $region19: #{conv_block_forward.3} parent=0 // pred_check_branch
    %345 = sbr.rel (0) target = $region21
  $region20: #{conv_block_forward.3} parent=0 // pred_region
    _
  $region21: #{conv_block_forward.3} parent=0 // pred_fallthru
    _

// kernel: conv_block_forward.2
$region0: #{conv_block_forward.2}
  #allocation0 [shape = 'u32[]', space=smem, size = 0x4, offset = 0x4, fixed_abs, tag = 'smem constant byte address 0x4 - core index']
  #allocation1 [shape = 'u32[72,128]{1,0:T(1,128)}', space=vmem, size = 0x9000, scoped, tag = 'internal scratch']
  #allocation2 [shape = 'f32[512,128]{1,0:T(8,128)}', space=vmem, size = 0x40000, scoped, tag = 'scratch operand']
  %s0 = inlined_call_operand.vmem [shape: bf16[512,128], index: 0, kind: input, shape index: {}]
  %s1 = inlined_call_operand.vmem [shape: bf16[128,128], index: 1, kind: input, shape index: {}]
  %s2 = inlined_call_operand.vmem [shape: bf16[512,128], index: 2, kind: output, shape index: {0}]
  %s3 = inlined_call_operand.vmem [shape: f32[1,128], index: 3, kind: output, shape index: {1}]
  %s4 = inlined_call_operand.vmem [shape: f32[1,128], index: 4, kind: output, shape index: {2}]
  %5 = xla_tuple %s2, %s3, %s4
  %s6 = sld [smem:[#allocation0]]
  $region46: #{conv_block_forward.2} parent=0
    _
  %s8 = ssub.s32 1, %s6
  %s9 = scalar_select 0, %s8, %s6
  // Predicated region
  $region2: #{conv_block_forward.2} parent=0 // pred_check
    _
  $region3: #{conv_block_forward.2} parent=0 // pred_check_branch
    %11 = sbr.rel (0) target = $region5
  $region4: #{conv_block_forward.2} parent=0 // pred_region
    _
  $region5: #{conv_block_forward.2} parent=0 // pred_fallthru
    _
  // Predicated region
  $region6: #{conv_block_forward.2} parent=0 // pred_check
    _
  $region7: #{conv_block_forward.2} parent=0 // pred_check_branch
    %13 = sbr.rel (0) target = $region9
  $region8: #{conv_block_forward.2} parent=0 // pred_region
    _
  $region9: #{conv_block_forward.2} parent=0 // pred_fallthru
    _
  %p14 = scmp.eq.s32.totalorder 0, 0
  %p15 = scmp.eq.s32.totalorder 0, 0
  %p16 = pnand %p14, %p15
  %p17 = pneg %p16
  // Predicated region
  $region10: #{conv_block_forward.2} parent=0 // pred_check
    _
  $region11: #{conv_block_forward.2} parent=0 // pred_check_branch
    %19 = sbr.rel (%p16) target = $region13
  $region12: #{conv_block_forward.2} parent=0 // pred_region
    %20 = vst [vmem:[%s3] sm:$0x1] 0.0
    %21 = vst [vmem:[%s4] sm:$0x1] 0.0
  $region13: #{conv_block_forward.2} parent=0 // pred_fallthru
    _
  // Predicated region
  $region14: #{conv_block_forward.2} parent=0 // pred_check
    %p22 = pneg %p15
  $region15: #{conv_block_forward.2} parent=0 // pred_check_branch
    %24 = sbr.rel (%p22) target = $region17
  $region16: #{conv_block_forward.2} parent=0 // pred_region
    %25 = vst [vmem:[#allocation2] sm:$0xff] 0.0
    %26 = vst [vmem:[#allocation2 + $0x8] sm:$0xff] 0.0
    %27 = vst [vmem:[#allocation2 + $0x10] sm:$0xff] 0.0
    %28 = vst [vmem:[#allocation2 + $0x18] sm:$0xff] 0.0
    %29 = vst [vmem:[#allocation2 + $0x20] sm:$0xff] 0.0
    %30 = vst [vmem:[#allocation2 + $0x28] sm:$0xff] 0.0
    %31 = vst [vmem:[#allocation2 + $0x30] sm:$0xff] 0.0
    %32 = vst [vmem:[#allocation2 + $0x38] sm:$0xff] 0.0
    %33 = vst [vmem:[#allocation2 + $0x40] sm:$0xff] 0.0
    %34 = vst [vmem:[#allocation2 + $0x48] sm:$0xff] 0.0
    %35 = vst [vmem:[#allocation2 + $0x50] sm:$0xff] 0.0
    %36 = vst [vmem:[#allocation2 + $0x58] sm:$0xff] 0.0
    %37 = vst [vmem:[#allocation2 + $0x60] sm:$0xff] 0.0
    %38 = vst [vmem:[#allocation2 + $0x68] sm:$0xff] 0.0
    %39 = vst [vmem:[#allocation2 + $0x70] sm:$0xff] 0.0
    %40 = vst [vmem:[#allocation2 + $0x78] sm:$0xff] 0.0
    %41 = vst [vmem:[#allocation2 + $0x80] sm:$0xff] 0.0
    %42 = vst [vmem:[#allocation2 + $0x88] sm:$0xff] 0.0
    %43 = vst [vmem:[#allocation2 + $0x90] sm:$0xff] 0.0
    %44 = vst [vmem:[#allocation2 + $0x98] sm:$0xff] 0.0
    %45 = vst [vmem:[#allocation2 + $0xa0] sm:$0xff] 0.0
    %46 = vst [vmem:[#allocation2 + $0xa8] sm:$0xff] 0.0
    %47 = vst [vmem:[#allocation2 + $0xb0] sm:$0xff] 0.0
    %48 = vst [vmem:[#allocation2 + $0xb8] sm:$0xff] 0.0
    %49 = vst [vmem:[#allocation2 + $0xc0] sm:$0xff] 0.0
    %50 = vst [vmem:[#allocation2 + $0xc8] sm:$0xff] 0.0
    %51 = vst [vmem:[#allocation2 + $0xd0] sm:$0xff] 0.0
    %52 = vst [vmem:[#allocation2 + $0xd8] sm:$0xff] 0.0
    %53 = vst [vmem:[#allocation2 + $0xe0] sm:$0xff] 0.0
    %54 = vst [vmem:[#allocation2 + $0xe8] sm:$0xff] 0.0
    %55 = vst [vmem:[#allocation2 + $0xf0] sm:$0xff] 0.0
    %56 = vst [vmem:[#allocation2 + $0xf8] sm:$0xff] 0.0
    %57 = vst [vmem:[#allocation2 + $0x100] sm:$0xff] 0.0
    %58 = vst [vmem:[#allocation2 + $0x108] sm:$0xff] 0.0
    %59 = vst [vmem:[#allocation2 + $0x110] sm:$0xff] 0.0
    %60 = vst [vmem:[#allocation2 + $0x118] sm:$0xff] 0.0
    %61 = vst [vmem:[#allocation2 + $0x120] sm:$0xff] 0.0
    %62 = vst [vmem:[#allocation2 + $0x128] sm:$0xff] 0.0
    %63 = vst [vmem:[#allocation2 + $0x130] sm:$0xff] 0.0
    %64 = vst [vmem:[#allocation2 + $0x138] sm:$0xff] 0.0
    %65 = vst [vmem:[#allocation2 + $0x140] sm:$0xff] 0.0
    %66 = vst [vmem:[#allocation2 + $0x148] sm:$0xff] 0.0
    %67 = vst [vmem:[#allocation2 + $0x150] sm:$0xff] 0.0
    %68 = vst [vmem:[#allocation2 + $0x158] sm:$0xff] 0.0
    %69 = vst [vmem:[#allocation2 + $0x160] sm:$0xff] 0.0
    %70 = vst [vmem:[#allocation2 + $0x168] sm:$0xff] 0.0
    %71 = vst [vmem:[#allocation2 + $0x170] sm:$0xff] 0.0
    %72 = vst [vmem:[#allocation2 + $0x178] sm:$0xff] 0.0
    %73 = vst [vmem:[#allocation2 + $0x180] sm:$0xff] 0.0
    %74 = vst [vmem:[#allocation2 + $0x188] sm:$0xff] 0.0
    %75 = vst [vmem:[#allocation2 + $0x190] sm:$0xff] 0.0
    %76 = vst [vmem:[#allocation2 + $0x198] sm:$0xff] 0.0
    %77 = vst [vmem:[#allocation2 + $0x1a0] sm:$0xff] 0.0
    %78 = vst [vmem:[#allocation2 + $0x1a8] sm:$0xff] 0.0
    %79 = vst [vmem:[#allocation2 + $0x1b0] sm:$0xff] 0.0
    %80 = vst [vmem:[#allocation2 + $0x1b8] sm:$0xff] 0.0
    %81 = vst [vmem:[#allocation2 + $0x1c0] sm:$0xff] 0.0
    %82 = vst [vmem:[#allocation2 + $0x1c8] sm:$0xff] 0.0
    %83 = vst [vmem:[#allocation2 + $0x1d0] sm:$0xff] 0.0
    %84 = vst [vmem:[#allocation2 + $0x1d8] sm:$0xff] 0.0
    %85 = vst [vmem:[#allocation2 + $0x1e0] sm:$0xff] 0.0
    %86 = vst [vmem:[#allocation2 + $0x1e8] sm:$0xff] 0.0
    %87 = vst [vmem:[#allocation2 + $0x1f0] sm:$0xff] 0.0
    %88 = vst [vmem:[#allocation2 + $0x1f8] sm:$0xff] 0.0
  $region17: #{conv_block_forward.2} parent=0 // pred_fallthru
    _
  %v89 = vld [vmem:[#allocation2] sm:$0xff]
  %v90 = vld [vmem:[#allocation2 + $0x8] sm:$0xff]
  %v91 = vld [vmem:[#allocation2 + $0x10] sm:$0xff]
  %v92 = vld [vmem:[#allocation2 + $0x18] sm:$0xff]
  %v93 = vld [vmem:[#allocation2 + $0x20] sm:$0xff]
  %v94 = vld [vmem:[#allocation2 + $0x28] sm:$0xff]
  %v95 = vld [vmem:[#allocation2 + $0x30] sm:$0xff]
  %v96 = vld [vmem:[#allocation2 + $0x38] sm:$0xff]
  %v97 = vld [vmem:[#allocation2 + $0x40] sm:$0xff]
  %v98 = vld [vmem:[#allocation2 + $0x48] sm:$0xff]
  %v99 = vld [vmem:[#allocation2 + $0x50] sm:$0xff]
  %v100 = vld [vmem:[#allocation2 + $0x58] sm:$0xff]
  %v101 = vld [vmem:[#allocation2 + $0x60] sm:$0xff]
  %v102 = vld [vmem:[#allocation2 + $0x68] sm:$0xff]
  %v103 = vld [vmem:[#allocation2 + $0x70] sm:$0xff]
  %v104 = vld [vmem:[#allocation2 + $0x78] sm:$0xff]
  %v105 = vld [vmem:[#allocation2 + $0x80] sm:$0xff]
  %v106 = vld [vmem:[#allocation2 + $0x88] sm:$0xff]
  %v107 = vld [vmem:[#allocation2 + $0x90] sm:$0xff]
  %v108 = vld [vmem:[#allocation2 + $0x98] sm:$0xff]
  %v109 = vld [vmem:[#allocation2 + $0xa0] sm:$0xff]
  %v110 = vld [vmem:[#allocation2 + $0xa8] sm:$0xff]
  %v111 = vld [vmem:[#allocation2 + $0xb0] sm:$0xff]
  %v112 = vld [vmem:[#allocation2 + $0xb8] sm:$0xff]
  %v113 = vld [vmem:[#allocation2 + $0xc0] sm:$0xff]
  %v114 = vld [vmem:[#allocation2 + $0xc8] sm:$0xff]
  %v115 = vld [vmem:[#allocation2 + $0xd0] sm:$0xff]
  %v116 = vld [vmem:[#allocation2 + $0xd8] sm:$0xff]
  %v117 = vld [vmem:[#allocation2 + $0xe0] sm:$0xff]
  %v118 = vld [vmem:[#allocation2 + $0xe8] sm:$0xff]
  %v119 = vld [vmem:[#allocation2 + $0xf0] sm:$0xff]
  %v120 = vld [vmem:[#allocation2 + $0xf8] sm:$0xff]
  %v121 = vld [vmem:[#allocation2 + $0x100] sm:$0xff]
  %v122 = vld [vmem:[#allocation2 + $0x108] sm:$0xff]
  %v123 = vld [vmem:[#allocation2 + $0x110] sm:$0xff]
  %v124 = vld [vmem:[#allocation2 + $0x118] sm:$0xff]
  %v125 = vld [vmem:[#allocation2 + $0x120] sm:$0xff]
  %v126 = vld [vmem:[#allocation2 + $0x128] sm:$0xff]
  %v127 = vld [vmem:[#allocation2 + $0x130] sm:$0xff]
  %v128 = vld [vmem:[#allocation2 + $0x138] sm:$0xff]
  %v129 = vld [vmem:[#allocation2 + $0x140] sm:$0xff]
  %v130 = vld [vmem:[#allocation2 + $0x148] sm:$0xff]
  %v131 = vld [vmem:[#allocation2 + $0x150] sm:$0xff]
  %v132 = vld [vmem:[#allocation2 + $0x158] sm:$0xff]
  %v133 = vld [vmem:[#allocation2 + $0x160] sm:$0xff]
  %v134 = vld [vmem:[#allocation2 + $0x168] sm:$0xff]
  %v135 = vld [vmem:[#allocation2 + $0x170] sm:$0xff]
  %v136 = vld [vmem:[#allocation2 + $0x178] sm:$0xff]
  %v137 = vld [vmem:[#allocation2 + $0x180] sm:$0xff]
  %v138 = vld [vmem:[#allocation2 + $0x188] sm:$0xff]
  %v139 = vld [vmem:[#allocation2 + $0x190] sm:$0xff]
  %v140 = vld [vmem:[#allocation2 + $0x198] sm:$0xff]
  %v141 = vld [vmem:[#allocation2 + $0x1a0] sm:$0xff]
  %v142 = vld [vmem:[#allocation2 + $0x1a8] sm:$0xff]
  %v143 = vld [vmem:[#allocation2 + $0x1b0] sm:$0xff]
  %v144 = vld [vmem:[#allocation2 + $0x1b8] sm:$0xff]
  %v145 = vld [vmem:[#allocation2 + $0x1c0] sm:$0xff]
  %v146 = vld [vmem:[#allocation2 + $0x1c8] sm:$0xff]
  %v147 = vld [vmem:[#allocation2 + $0x1d0] sm:$0xff]
  %v148 = vld [vmem:[#allocation2 + $0x1d8] sm:$0xff]
  %v149 = vld [vmem:[#allocation2 + $0x1e0] sm:$0xff]
  %v150 = vld [vmem:[#allocation2 + $0x1e8] sm:$0xff]
  %v151 = vld [vmem:[#allocation2 + $0x1f0] sm:$0xff]
  %v152 = vld [vmem:[#allocation2 + $0x1f8] sm:$0xff]
  %v153 = vld [vmem:[%s0] sm:$0xf]
  %v154 = vld [vmem:[%s0 + $0x4] sm:$0xf]
  %v155 = vld [vmem:[%s0 + $0x8] sm:$0xf]
  %v156 = vld [vmem:[%s0 + $0xc] sm:$0xf]
  %v157 = vld [vmem:[%s0 + $0x10] sm:$0xf]
  %v158 = vld [vmem:[%s0 + $0x14] sm:$0xf]
  %v159 = vld [vmem:[%s0 + $0x18] sm:$0xf]
  %v160 = vld [vmem:[%s0 + $0x1c] sm:$0xf]
  %v161 = vld [vmem:[%s0 + $0x20] sm:$0xf]
  %v162 = vld [vmem:[%s0 + $0x24] sm:$0xf]
  %v163 = vld [vmem:[%s0 + $0x28] sm:$0xf]
  %v164 = vld [vmem:[%s0 + $0x2c] sm:$0xf]
  %v165 = vld [vmem:[%s0 + $0x30] sm:$0xf]
  %v166 = vld [vmem:[%s0 + $0x34] sm:$0xf]
  %v167 = vld [vmem:[%s0 + $0x38] sm:$0xf]
  %v168 = vld [vmem:[%s0 + $0x3c] sm:$0xf]
  %v169 = vld [vmem:[%s0 + $0x40] sm:$0xf]
  %v170 = vld [vmem:[%s0 + $0x44] sm:$0xf]
  %v171 = vld [vmem:[%s0 + $0x48] sm:$0xf]
  %v172 = vld [vmem:[%s0 + $0x4c] sm:$0xf]
  %v173 = vld [vmem:[%s0 + $0x50] sm:$0xf]
  %v174 = vld [vmem:[%s0 + $0x54] sm:$0xf]
  %v175 = vld [vmem:[%s0 + $0x58] sm:$0xf]
  %v176 = vld [vmem:[%s0 + $0x5c] sm:$0xf]
  %v177 = vld [vmem:[%s0 + $0x60] sm:$0xf]
  %v178 = vld [vmem:[%s0 + $0x64] sm:$0xf]
  %v179 = vld [vmem:[%s0 + $0x68] sm:$0xf]
  %v180 = vld [vmem:[%s0 + $0x6c] sm:$0xf]
  %v181 = vld [vmem:[%s0 + $0x70] sm:$0xf]
  %v182 = vld [vmem:[%s0 + $0x74] sm:$0xf]
  %v183 = vld [vmem:[%s0 + $0x78] sm:$0xf]
  %v184 = vld [vmem:[%s0 + $0x7c] sm:$0xf]
  %v185 = vld [vmem:[%s0 + $0x80] sm:$0xf]
  %v186 = vld [vmem:[%s0 + $0x84] sm:$0xf]
  %v187 = vld [vmem:[%s0 + $0x88] sm:$0xf]
  %v188 = vld [vmem:[%s0 + $0x8c] sm:$0xf]
  %v189 = vld [vmem:[%s0 + $0x90] sm:$0xf]
  %v190 = vld [vmem:[%s0 + $0x94] sm:$0xf]
  %v191 = vld [vmem:[%s0 + $0x98] sm:$0xf]
  %v192 = vld [vmem:[%s0 + $0x9c] sm:$0xf]
  %v193 = vld [vmem:[%s0 + $0xa0] sm:$0xf]
  %v194 = vld [vmem:[%s0 + $0xa4] sm:$0xf]
  %v195 = vld [vmem:[%s0 + $0xa8] sm:$0xf]
  %v196 = vld [vmem:[%s0 + $0xac] sm:$0xf]
  %v197 = vld [vmem:[%s0 + $0xb0] sm:$0xf]
  %v198 = vld [vmem:[%s0 + $0xb4] sm:$0xf]
  %v199 = vld [vmem:[%s0 + $0xb8] sm:$0xf]
  %v200 = vld [vmem:[%s0 + $0xbc] sm:$0xf]
  %v201 = vld [vmem:[%s0 + $0xc0] sm:$0xf]
  %v202 = vld [vmem:[%s0 + $0xc4] sm:$0xf]
  %v203 = vld [vmem:[%s0 + $0xc8] sm:$0xf]
  %v204 = vld [vmem:[%s0 + $0xcc] sm:$0xf]
  %v205 = vld [vmem:[%s0 + $0xd0] sm:$0xf]
  %v206 = vld [vmem:[%s0 + $0xd4] sm:$0xf]
  %v207 = vld [vmem:[%s0 + $0xd8] sm:$0xf]
  %v208 = vld [vmem:[%s0 + $0xdc] sm:$0xf]
  %v209 = vld [vmem:[%s0 + $0xe0] sm:$0xf]
  %v210 = vld [vmem:[%s0 + $0xe4] sm:$0xf]
  %v211 = vld [vmem:[%s0 + $0xe8] sm:$0xf]
  %v212 = vld [vmem:[%s0 + $0xec] sm:$0xf]
  %v213 = vld [vmem:[%s0 + $0xf0] sm:$0xf]
  %v214 = vld [vmem:[%s0 + $0xf4] sm:$0xf]
  %v215 = vld [vmem:[%s0 + $0xf8] sm:$0xf]
  %v216 = vld [vmem:[%s0 + $0xfc] sm:$0xf]
  %v217 = vld [vmem:[%s1] sm:$0xf]
  %v218 = vld [vmem:[%s1 + $0x4] sm:$0xf]
  %v219 = vld [vmem:[%s1 + $0x8] sm:$0xf]
  %v220 = vld [vmem:[%s1 + $0xc] sm:$0xf]
  %v221 = vld [vmem:[%s1 + $0x10] sm:$0xf]
  %v222 = vld [vmem:[%s1 + $0x14] sm:$0xf]
  %v223 = vld [vmem:[%s1 + $0x18] sm:$0xf]
  %v224 = vld [vmem:[%s1 + $0x1c] sm:$0xf]
  %v225 = vld [vmem:[%s1 + $0x20] sm:$0xf]
  %v226 = vld [vmem:[%s1 + $0x24] sm:$0xf]
  %v227 = vld [vmem:[%s1 + $0x28] sm:$0xf]
  %v228 = vld [vmem:[%s1 + $0x2c] sm:$0xf]
  %v229 = vld [vmem:[%s1 + $0x30] sm:$0xf]
  %v230 = vld [vmem:[%s1 + $0x34] sm:$0xf]
  %v231 = vld [vmem:[%s1 + $0x38] sm:$0xf]
  %v232 = vld [vmem:[%s1 + $0x3c] sm:$0xf]
  %v297 = vunpack.c.l.b16 %v153
  %v298 = vunpack.c.l.b16 %v154
  %v299 = vunpack.c.l.b16 %v155
  %v300 = vunpack.c.l.b16 %v156
  %v301 = vunpack.c.l.b16 %v157
  %v302 = vunpack.c.l.b16 %v158
  %v303 = vunpack.c.l.b16 %v159
  %v304 = vunpack.c.l.b16 %v160
  %v305 = vunpack.c.l.b16 %v161
  %v306 = vunpack.c.l.b16 %v162
  %v307 = vunpack.c.l.b16 %v163
  %v308 = vunpack.c.l.b16 %v164
  %v309 = vunpack.c.l.b16 %v165
  %v310 = vunpack.c.l.b16 %v166
  %v311 = vunpack.c.l.b16 %v167
  %v312 = vunpack.c.l.b16 %v168
  %v313 = vunpack.c.l.b16 %v169
  %v314 = vunpack.c.l.b16 %v170
  %v315 = vunpack.c.l.b16 %v171
  %v316 = vunpack.c.l.b16 %v172
  %v317 = vunpack.c.l.b16 %v173
  %v318 = vunpack.c.l.b16 %v174
  %v319 = vunpack.c.l.b16 %v175
  %v320 = vunpack.c.l.b16 %v176
  %v321 = vunpack.c.l.b16 %v177
  %v322 = vunpack.c.l.b16 %v178
  %v323 = vunpack.c.l.b16 %v179
  %v324 = vunpack.c.l.b16 %v180
  %v325 = vunpack.c.l.b16 %v181
  %v326 = vunpack.c.l.b16 %v182
  %v327 = vunpack.c.l.b16 %v183
  %v328 = vunpack.c.l.b16 %v184
  %v329 = vunpack.c.l.b16 %v185
  %v330 = vunpack.c.l.b16 %v186
  %v331 = vunpack.c.l.b16 %v187
  %v332 = vunpack.c.l.b16 %v188
  %v333 = vunpack.c.l.b16 %v189
  %v334 = vunpack.c.l.b16 %v190
  %v335 = vunpack.c.l.b16 %v191
  %v336 = vunpack.c.l.b16 %v192
  %v337 = vunpack.c.l.b16 %v193
  %v338 = vunpack.c.l.b16 %v194
  %v339 = vunpack.c.l.b16 %v195
  %v340 = vunpack.c.l.b16 %v196
  %v341 = vunpack.c.l.b16 %v197
  %v342 = vunpack.c.l.b16 %v198
  %v343 = vunpack.c.l.b16 %v199
  %v344 = vunpack.c.l.b16 %v200
  %v345 = vunpack.c.l.b16 %v201
  %v346 = vunpack.c.l.b16 %v202
  %v347 = vunpack.c.l.b16 %v203
  %v348 = vunpack.c.l.b16 %v204
  %v349 = vunpack.c.l.b16 %v205
  %v350 = vunpack.c.l.b16 %v206
  %v351 = vunpack.c.l.b16 %v207
  %v352 = vunpack.c.l.b16 %v208
  %v353 = vunpack.c.l.b16 %v209
  %v354 = vunpack.c.l.b16 %v210
  %v355 = vunpack.c.l.b16 %v211
  %v356 = vunpack.c.l.b16 %v212
  %v357 = vunpack.c.l.b16 %v213
  %v358 = vunpack.c.l.b16 %v214
  %v359 = vunpack.c.l.b16 %v215
  %v360 = vunpack.c.l.b16 %v216
  %v361 = vpack.c.b16 %v298, %v297
  %v362 = vpack.c.b16 %v300, %v299
  %v363 = vpack.c.b16 %v302, %v301
  %v364 = vpack.c.b16 %v304, %v303
  %v365 = vpack.c.b16 %v306, %v305
  %v366 = vpack.c.b16 %v308, %v307
  %v367 = vpack.c.b16 %v310, %v309
  %v368 = vpack.c.b16 %v312, %v311
  %v369 = vpack.c.b16 %v314, %v313
  %v370 = vpack.c.b16 %v316, %v315
  %v371 = vpack.c.b16 %v318, %v317
  %v372 = vpack.c.b16 %v320, %v319
  %v373 = vpack.c.b16 %v322, %v321
  %v374 = vpack.c.b16 %v324, %v323
  %v375 = vpack.c.b16 %v326, %v325
  %v376 = vpack.c.b16 %v328, %v327
  %v377 = vpack.c.b16 %v330, %v329
  %v378 = vpack.c.b16 %v332, %v331
  %v379 = vpack.c.b16 %v334, %v333
  %v380 = vpack.c.b16 %v336, %v335
  %v381 = vpack.c.b16 %v338, %v337
  %v382 = vpack.c.b16 %v340, %v339
  %v383 = vpack.c.b16 %v342, %v341
  %v384 = vpack.c.b16 %v344, %v343
  %v385 = vpack.c.b16 %v346, %v345
  %v386 = vpack.c.b16 %v348, %v347
  %v387 = vpack.c.b16 %v350, %v349
  %v388 = vpack.c.b16 %v352, %v351
  %v389 = vpack.c.b16 %v354, %v353
  %v390 = vpack.c.b16 %v356, %v355
  %v391 = vpack.c.b16 %v358, %v357
  %v392 = vpack.c.b16 %v360, %v359
  %v441 = vunpack.c.l.b16 %v217
  %v442 = vunpack.c.l.b16 %v218
  %v443 = vunpack.c.l.b16 %v219
  %v444 = vunpack.c.l.b16 %v220
  %v445 = vunpack.c.l.b16 %v221
  %v446 = vunpack.c.l.b16 %v222
  %v447 = vunpack.c.l.b16 %v223
  %v448 = vunpack.c.l.b16 %v224
  %v449 = vunpack.c.l.b16 %v225
  %v450 = vunpack.c.l.b16 %v226
  %v451 = vunpack.c.l.b16 %v227
  %v452 = vunpack.c.l.b16 %v228
  %v453 = vunpack.c.l.b16 %v229
  %v454 = vunpack.c.l.b16 %v230
  %v455 = vunpack.c.l.b16 %v231
  %v456 = vunpack.c.l.b16 %v232
  %v457 = vpack.c.b16 %v442, %v441
  %v458 = vpack.c.b16 %v444, %v443
  %v459 = vpack.c.b16 %v446, %v445
  %v460 = vpack.c.b16 %v448, %v447
  %v461 = vpack.c.b16 %v450, %v449
  %v462 = vpack.c.b16 %v452, %v451
  %v463 = vpack.c.b16 %v454, %v453
  %v464 = vpack.c.b16 %v456, %v455
  %473 = vmatpush.bf16.msra.mxu0 %v464
  %474 = vmatpush.bf16.msra.mxu0 %v463
  %475 = vmatpush.bf16.msra.mxu0 %v462
  %476 = vmatpush.bf16.msra.mxu0 %v461
  %477 = vmatpush.bf16.msra.mxu0 %v460
  %478 = vmatpush.bf16.msra.mxu0 %v459
  %479 = vmatpush.bf16.msra.mxu0 %v458
  %480 = vmatpush.bf16.msra.mxu0 %v457
  %481 = vmatmul.bf16.gmra.mxu0 %v361
  %v482 = vpop.f32.mrf.mxu0
  %v483 = vadd.f32 0.0, %v482
  %v484 = vpop.f32.mrf.mxu0
  %v485 = vadd.f32 0.0, %v484
  %486 = vmatmul.bf16.gmra.mxu0 %v362
  %v487 = vpop.f32.mrf.mxu0
  %v488 = vadd.f32 0.0, %v487
  %v489 = vpop.f32.mrf.mxu0
  %v490 = vadd.f32 0.0, %v489
  %491 = vmatmul.bf16.gmra.mxu0 %v363
  %v492 = vpop.f32.mrf.mxu0
  %v493 = vadd.f32 0.0, %v492
  %v494 = vpop.f32.mrf.mxu0
  %v495 = vadd.f32 0.0, %v494
  %496 = vmatmul.bf16.gmra.mxu0 %v364
  %v497 = vpop.f32.mrf.mxu0
  %v498 = vadd.f32 0.0, %v497
  %v499 = vpop.f32.mrf.mxu0
  %v500 = vadd.f32 0.0, %v499
  %501 = vmatmul.bf16.gmra.mxu0 %v365
  %v502 = vpop.f32.mrf.mxu0
  %v503 = vadd.f32 0.0, %v502
  %v504 = vpop.f32.mrf.mxu0
  %v505 = vadd.f32 0.0, %v504
  %506 = vmatmul.bf16.gmra.mxu0 %v366
  %v507 = vpop.f32.mrf.mxu0
  %v508 = vadd.f32 0.0, %v507
  %v509 = vpop.f32.mrf.mxu0
  %v510 = vadd.f32 0.0, %v509
  %511 = vmatmul.bf16.gmra.mxu0 %v367
  %v512 = vpop.f32.mrf.mxu0
  %v513 = vadd.f32 0.0, %v512
  %v514 = vpop.f32.mrf.mxu0
  %v515 = vadd.f32 0.0, %v514
  %516 = vmatmul.bf16.gmra.mxu0 %v368
  %v517 = vpop.f32.mrf.mxu0
  %v518 = vadd.f32 0.0, %v517
  %v519 = vpop.f32.mrf.mxu0
  %v520 = vadd.f32 0.0, %v519
  %521 = vmatmul.bf16.gmra.mxu0 %v369
  %v522 = vpop.f32.mrf.mxu0
  %v523 = vadd.f32 0.0, %v522
  %v524 = vpop.f32.mrf.mxu0
  %v525 = vadd.f32 0.0, %v524
  %526 = vmatmul.bf16.gmra.mxu0 %v370
  %v527 = vpop.f32.mrf.mxu0
  %v528 = vadd.f32 0.0, %v527
  %v529 = vpop.f32.mrf.mxu0
  %v530 = vadd.f32 0.0, %v529
  %531 = vmatmul.bf16.gmra.mxu0 %v371
  %v532 = vpop.f32.mrf.mxu0
  %v533 = vadd.f32 0.0, %v532
  %v534 = vpop.f32.mrf.mxu0
  %v535 = vadd.f32 0.0, %v534
  %536 = vmatmul.bf16.gmra.mxu0 %v372
  %v537 = vpop.f32.mrf.mxu0
  %v538 = vadd.f32 0.0, %v537
  %v539 = vpop.f32.mrf.mxu0
  %v540 = vadd.f32 0.0, %v539
  %541 = vmatmul.bf16.gmra.mxu0 %v373
  %v542 = vpop.f32.mrf.mxu0
  %v543 = vadd.f32 0.0, %v542
  %v544 = vpop.f32.mrf.mxu0
  %v545 = vadd.f32 0.0, %v544
  %546 = vmatmul.bf16.gmra.mxu0 %v374
  %v547 = vpop.f32.mrf.mxu0
  %v548 = vadd.f32 0.0, %v547
  %v549 = vpop.f32.mrf.mxu0
  %v550 = vadd.f32 0.0, %v549
  %551 = vmatmul.bf16.gmra.mxu0 %v375
  %v552 = vpop.f32.mrf.mxu0
  %v553 = vadd.f32 0.0, %v552
  %v554 = vpop.f32.mrf.mxu0
  %v555 = vadd.f32 0.0, %v554
  %556 = vmatmul.bf16.gmra.mxu0 %v376
  %v557 = vpop.f32.mrf.mxu0
  %v558 = vadd.f32 0.0, %v557
  %v559 = vpop.f32.mrf.mxu0
  %v560 = vadd.f32 0.0, %v559
  %561 = vmatmul.bf16.gmra.mxu0 %v377
  %v562 = vpop.f32.mrf.mxu0
  %v563 = vadd.f32 0.0, %v562
  %v564 = vpop.f32.mrf.mxu0
  %v565 = vadd.f32 0.0, %v564
  %566 = vmatmul.bf16.gmra.mxu0 %v378
  %v567 = vpop.f32.mrf.mxu0
  %v568 = vadd.f32 0.0, %v567
  %v569 = vpop.f32.mrf.mxu0
  %v570 = vadd.f32 0.0, %v569
  %571 = vmatmul.bf16.gmra.mxu0 %v379
  %v572 = vpop.f32.mrf.mxu0
  %v573 = vadd.f32 0.0, %v572
  %v574 = vpop.f32.mrf.mxu0
  %v575 = vadd.f32 0.0, %v574
  %576 = vmatmul.bf16.gmra.mxu0 %v380
  %v577 = vpop.f32.mrf.mxu0
  %v578 = vadd.f32 0.0, %v577
  %v579 = vpop.f32.mrf.mxu0
  %v580 = vadd.f32 0.0, %v579
  %581 = vmatmul.bf16.gmra.mxu0 %v381
  %v582 = vpop.f32.mrf.mxu0
  %v583 = vadd.f32 0.0, %v582
  %v584 = vpop.f32.mrf.mxu0
  %v585 = vadd.f32 0.0, %v584
  %586 = vmatmul.bf16.gmra.mxu0 %v382
  %v587 = vpop.f32.mrf.mxu0
  %v588 = vadd.f32 0.0, %v587
  %v589 = vpop.f32.mrf.mxu0
  %v590 = vadd.f32 0.0, %v589
  %591 = vmatmul.bf16.gmra.mxu0 %v383
  %v592 = vpop.f32.mrf.mxu0
  %v593 = vadd.f32 0.0, %v592
  %v594 = vpop.f32.mrf.mxu0
  %v595 = vadd.f32 0.0, %v594
  %596 = vmatmul.bf16.gmra.mxu0 %v384
  %v597 = vpop.f32.mrf.mxu0
  %v598 = vadd.f32 0.0, %v597
  %v599 = vpop.f32.mrf.mxu0
  %v600 = vadd.f32 0.0, %v599
  %601 = vmatmul.bf16.gmra.mxu0 %v385
  %v602 = vpop.f32.mrf.mxu0
  %v603 = vadd.f32 0.0, %v602
  %v604 = vpop.f32.mrf.mxu0
  %v605 = vadd.f32 0.0, %v604
  %606 = vmatmul.bf16.gmra.mxu0 %v386
  %v607 = vpop.f32.mrf.mxu0
  %v608 = vadd.f32 0.0, %v607
  %v609 = vpop.f32.mrf.mxu0
  %v610 = vadd.f32 0.0, %v609
  %611 = vmatmul.bf16.gmra.mxu0 %v387
  %v612 = vpop.f32.mrf.mxu0
  %v613 = vadd.f32 0.0, %v612
  %v614 = vpop.f32.mrf.mxu0
  %v615 = vadd.f32 0.0, %v614
  %616 = vmatmul.bf16.gmra.mxu0 %v388
  %v617 = vpop.f32.mrf.mxu0
  %v618 = vadd.f32 0.0, %v617
  %v619 = vpop.f32.mrf.mxu0
  %v620 = vadd.f32 0.0, %v619
  %621 = vmatmul.bf16.gmra.mxu0 %v389
  %v622 = vpop.f32.mrf.mxu0
  %v623 = vadd.f32 0.0, %v622
  %v624 = vpop.f32.mrf.mxu0
  %v625 = vadd.f32 0.0, %v624
  %626 = vmatmul.bf16.gmra.mxu0 %v390
  %v627 = vpop.f32.mrf.mxu0
  %v628 = vadd.f32 0.0, %v627
  %v629 = vpop.f32.mrf.mxu0
  %v630 = vadd.f32 0.0, %v629
  %631 = vmatmul.bf16.gmra.mxu0 %v391
  %v632 = vpop.f32.mrf.mxu0
  %v633 = vadd.f32 0.0, %v632
  %v634 = vpop.f32.mrf.mxu0
  %v635 = vadd.f32 0.0, %v634
  %636 = vmatmul.bf16.gmra.mxu0 %v392
  %v637 = vpop.f32.mrf.mxu0
  %v638 = vadd.f32 0.0, %v637
  %v639 = vpop.f32.mrf.mxu0
  %v640 = vadd.f32 0.0, %v639
  %641 = vdwg.mxu0
  %v642 = vadd.f32 %v89, %v483
  %v643 = vadd.f32 %v90, %v485
  %v644 = vadd.f32 %v91, %v488
  %v645 = vadd.f32 %v92, %v490
  %v646 = vadd.f32 %v93, %v493
  %v647 = vadd.f32 %v94, %v495
  %v648 = vadd.f32 %v95, %v498
  %v649 = vadd.f32 %v96, %v500
  %v650 = vadd.f32 %v97, %v503
  %v651 = vadd.f32 %v98, %v505
  %v652 = vadd.f32 %v99, %v508
  %v653 = vadd.f32 %v100, %v510
  %v654 = vadd.f32 %v101, %v513
  %v655 = vadd.f32 %v102, %v515
  %v656 = vadd.f32 %v103, %v518
  %v657 = vadd.f32 %v104, %v520
  %v658 = vadd.f32 %v105, %v523
  %v659 = vadd.f32 %v106, %v525
  %v660 = vadd.f32 %v107, %v528
  %v661 = vadd.f32 %v108, %v530
  %v662 = vadd.f32 %v109, %v533
  %v663 = vadd.f32 %v110, %v535
  %v664 = vadd.f32 %v111, %v538
  %v665 = vadd.f32 %v112, %v540
  %v666 = vadd.f32 %v113, %v543
  %v667 = vadd.f32 %v114, %v545
  %v668 = vadd.f32 %v115, %v548
  %v669 = vadd.f32 %v116, %v550
  %v670 = vadd.f32 %v117, %v553
  %v671 = vadd.f32 %v118, %v555
  %v672 = vadd.f32 %v119, %v558
  %v673 = vadd.f32 %v120, %v560
  %v674 = vadd.f32 %v121, %v563
  %v675 = vadd.f32 %v122, %v565
  %v676 = vadd.f32 %v123, %v568
  %v677 = vadd.f32 %v124, %v570
  %v678 = vadd.f32 %v125, %v573
  %v679 = vadd.f32 %v126, %v575
  %v680 = vadd.f32 %v127, %v578
  %v681 = vadd.f32 %v128, %v580
  %v682 = vadd.f32 %v129, %v583
  %v683 = vadd.f32 %v130, %v585
  %v684 = vadd.f32 %v131, %v588
  %v685 = vadd.f32 %v132, %v590
  %v686 = vadd.f32 %v133, %v593
  %v687 = vadd.f32 %v134, %v595
  %v688 = vadd.f32 %v135, %v598
  %v689 = vadd.f32 %v136, %v600
  %v690 = vadd.f32 %v137, %v603
  %v691 = vadd.f32 %v138, %v605
  %v692 = vadd.f32 %v139, %v608
  %v693 = vadd.f32 %v140, %v610
  %v694 = vadd.f32 %v141, %v613
  %v695 = vadd.f32 %v142, %v615
  %v696 = vadd.f32 %v143, %v618
  %v697 = vadd.f32 %v144, %v620
  %v698 = vadd.f32 %v145, %v623
  %v699 = vadd.f32 %v146, %v625
  %v700 = vadd.f32 %v147, %v628
  %v701 = vadd.f32 %v148, %v630
  %v702 = vadd.f32 %v149, %v633
  %v703 = vadd.f32 %v150, %v635
  %v704 = vadd.f32 %v151, %v638
  %v705 = vadd.f32 %v152, %v640
  %706 = vst [vmem:[#allocation2] sm:$0xff] %v642
  %707 = vst [vmem:[#allocation2 + $0x8] sm:$0xff] %v643
  %708 = vst [vmem:[#allocation2 + $0x10] sm:$0xff] %v644
  %709 = vst [vmem:[#allocation2 + $0x18] sm:$0xff] %v645
  %710 = vst [vmem:[#allocation2 + $0x20] sm:$0xff] %v646
  %711 = vst [vmem:[#allocation2 + $0x28] sm:$0xff] %v647
  %712 = vst [vmem:[#allocation2 + $0x30] sm:$0xff] %v648
  %713 = vst [vmem:[#allocation2 + $0x38] sm:$0xff] %v649
  %714 = vst [vmem:[#allocation2 + $0x40] sm:$0xff] %v650
  %715 = vst [vmem:[#allocation2 + $0x48] sm:$0xff] %v651
  %716 = vst [vmem:[#allocation2 + $0x50] sm:$0xff] %v652
  %717 = vst [vmem:[#allocation2 + $0x58] sm:$0xff] %v653
  %718 = vst [vmem:[#allocation2 + $0x60] sm:$0xff] %v654
  %719 = vst [vmem:[#allocation2 + $0x68] sm:$0xff] %v655
  %720 = vst [vmem:[#allocation2 + $0x70] sm:$0xff] %v656
  %721 = vst [vmem:[#allocation2 + $0x78] sm:$0xff] %v657
  %722 = vst [vmem:[#allocation2 + $0x80] sm:$0xff] %v658
  %723 = vst [vmem:[#allocation2 + $0x88] sm:$0xff] %v659
  %724 = vst [vmem:[#allocation2 + $0x90] sm:$0xff] %v660
  %725 = vst [vmem:[#allocation2 + $0x98] sm:$0xff] %v661
  %726 = vst [vmem:[#allocation2 + $0xa0] sm:$0xff] %v662
  %727 = vst [vmem:[#allocation2 + $0xa8] sm:$0xff] %v663
  %728 = vst [vmem:[#allocation2 + $0xb0] sm:$0xff] %v664
  %729 = vst [vmem:[#allocation2 + $0xb8] sm:$0xff] %v665
  %730 = vst [vmem:[#allocation2 + $0xc0] sm:$0xff] %v666
  %731 = vst [vmem:[#allocation2 + $0xc8] sm:$0xff] %v667
  %732 = vst [vmem:[#allocation2 + $0xd0] sm:$0xff] %v668
  %733 = vst [vmem:[#allocation2 + $0xd8] sm:$0xff] %v669
  %734 = vst [vmem:[#allocation2 + $0xe0] sm:$0xff] %v670
  %735 = vst [vmem:[#allocation2 + $0xe8] sm:$0xff] %v671
  %736 = vst [vmem:[#allocation2 + $0xf0] sm:$0xff] %v672
  %737 = vst [vmem:[#allocation2 + $0xf8] sm:$0xff] %v673
  %738 = vst [vmem:[#allocation2 + $0x100] sm:$0xff] %v674
  %739 = vst [vmem:[#allocation2 + $0x108] sm:$0xff] %v675
  %740 = vst [vmem:[#allocation2 + $0x110] sm:$0xff] %v676
  %741 = vst [vmem:[#allocation2 + $0x118] sm:$0xff] %v677
  %742 = vst [vmem:[#allocation2 + $0x120] sm:$0xff] %v678
  %743 = vst [vmem:[#allocation2 + $0x128] sm:$0xff] %v679
  %744 = vst [vmem:[#allocation2 + $0x130] sm:$0xff] %v680
  %745 = vst [vmem:[#allocation2 + $0x138] sm:$0xff] %v681
  %746 = vst [vmem:[#allocation2 + $0x140] sm:$0xff] %v682
  %747 = vst [vmem:[#allocation2 + $0x148] sm:$0xff] %v683
  %748 = vst [vmem:[#allocation2 + $0x150] sm:$0xff] %v684
  %749 = vst [vmem:[#allocation2 + $0x158] sm:$0xff] %v685
  %750 = vst [vmem:[#allocation2 + $0x160] sm:$0xff] %v686
  %751 = vst [vmem:[#allocation2 + $0x168] sm:$0xff] %v687
  %752 = vst [vmem:[#allocation2 + $0x170] sm:$0xff] %v688
  %753 = vst [vmem:[#allocation2 + $0x178] sm:$0xff] %v689
  %754 = vst [vmem:[#allocation2 + $0x180] sm:$0xff] %v690
  %755 = vst [vmem:[#allocation2 + $0x188] sm:$0xff] %v691
  %756 = vst [vmem:[#allocation2 + $0x190] sm:$0xff] %v692
  %757 = vst [vmem:[#allocation2 + $0x198] sm:$0xff] %v693
  %758 = vst [vmem:[#allocation2 + $0x1a0] sm:$0xff] %v694
  %759 = vst [vmem:[#allocation2 + $0x1a8] sm:$0xff] %v695
  %760 = vst [vmem:[#allocation2 + $0x1b0] sm:$0xff] %v696
  %761 = vst [vmem:[#allocation2 + $0x1b8] sm:$0xff] %v697
  %762 = vst [vmem:[#allocation2 + $0x1c0] sm:$0xff] %v698
  %763 = vst [vmem:[#allocation2 + $0x1c8] sm:$0xff] %v699
  %764 = vst [vmem:[#allocation2 + $0x1d0] sm:$0xff] %v700
  %765 = vst [vmem:[#allocation2 + $0x1d8] sm:$0xff] %v701
  %766 = vst [vmem:[#allocation2 + $0x1e0] sm:$0xff] %v702
  %767 = vst [vmem:[#allocation2 + $0x1e8] sm:$0xff] %v703
  %768 = vst [vmem:[#allocation2 + $0x1f0] sm:$0xff] %v704
  %769 = vst [vmem:[#allocation2 + $0x1f8] sm:$0xff] %v705
  // Predicated region
  $region18: #{conv_block_forward.2} parent=0 // pred_check
    %p770 = pneg %p15
  $region19: #{conv_block_forward.2} parent=0 // pred_check_branch
    %772 = sbr.rel (%p770) target = $region21
  $region20: #{conv_block_forward.2} parent=0 // pred_region
    %v773 = vld [vmem:[#allocation2] sm:$0xff]
    %v774 = vld [vmem:[#allocation2 + $0x8] sm:$0xff]
    %v775 = vld [vmem:[#allocation2 + $0x10] sm:$0xff]
    %v776 = vld [vmem:[#allocation2 + $0x18] sm:$0xff]
    %v777 = vld [vmem:[#allocation2 + $0x20] sm:$0xff]
    %v778 = vld [vmem:[#allocation2 + $0x28] sm:$0xff]
    %v779 = vld [vmem:[#allocation2 + $0x30] sm:$0xff]
    %v780 = vld [vmem:[#allocation2 + $0x38] sm:$0xff]
    %v781 = vld [vmem:[#allocation2 + $0x40] sm:$0xff]
    %v782 = vld [vmem:[#allocation2 + $0x48] sm:$0xff]
    %v783 = vld [vmem:[#allocation2 + $0x50] sm:$0xff]
    %v784 = vld [vmem:[#allocation2 + $0x58] sm:$0xff]
    %v785 = vld [vmem:[#allocation2 + $0x60] sm:$0xff]
    %v786 = vld [vmem:[#allocation2 + $0x68] sm:$0xff]
    %v787 = vld [vmem:[#allocation2 + $0x70] sm:$0xff]
    %v788 = vld [vmem:[#allocation2 + $0x78] sm:$0xff]
    %v789 = vld [vmem:[#allocation2 + $0x80] sm:$0xff]
    %v790 = vld [vmem:[#allocation2 + $0x88] sm:$0xff]
    %v791 = vld [vmem:[#allocation2 + $0x90] sm:$0xff]
    %v792 = vld [vmem:[#allocation2 + $0x98] sm:$0xff]
    %v793 = vld [vmem:[#allocation2 + $0xa0] sm:$0xff]
    %v794 = vld [vmem:[#allocation2 + $0xa8] sm:$0xff]
    %v795 = vld [vmem:[#allocation2 + $0xb0] sm:$0xff]
    %v796 = vld [vmem:[#allocation2 + $0xb8] sm:$0xff]
    %v797 = vld [vmem:[#allocation2 + $0xc0] sm:$0xff]
    %v798 = vld [vmem:[#allocation2 + $0xc8] sm:$0xff]
    %v799 = vld [vmem:[#allocation2 + $0xd0] sm:$0xff]
    %v800 = vld [vmem:[#allocation2 + $0xd8] sm:$0xff]
    %v801 = vld [vmem:[#allocation2 + $0xe0] sm:$0xff]
    %v802 = vld [vmem:[#allocation2 + $0xe8] sm:$0xff]
    %v803 = vld [vmem:[#allocation2 + $0xf0] sm:$0xff]
    %v804 = vld [vmem:[#allocation2 + $0xf8] sm:$0xff]
    %v805 = vld [vmem:[#allocation2 + $0x100] sm:$0xff]
    %v806 = vld [vmem:[#allocation2 + $0x108] sm:$0xff]
    %v807 = vld [vmem:[#allocation2 + $0x110] sm:$0xff]
    %v808 = vld [vmem:[#allocation2 + $0x118] sm:$0xff]
    %v809 = vld [vmem:[#allocation2 + $0x120] sm:$0xff]
    %v810 = vld [vmem:[#allocation2 + $0x128] sm:$0xff]
    %v811 = vld [vmem:[#allocation2 + $0x130] sm:$0xff]
    %v812 = vld [vmem:[#allocation2 + $0x138] sm:$0xff]
    %v813 = vld [vmem:[#allocation2 + $0x140] sm:$0xff]
    %v814 = vld [vmem:[#allocation2 + $0x148] sm:$0xff]
    %v815 = vld [vmem:[#allocation2 + $0x150] sm:$0xff]
    %v816 = vld [vmem:[#allocation2 + $0x158] sm:$0xff]
    %v817 = vld [vmem:[#allocation2 + $0x160] sm:$0xff]
    %v818 = vld [vmem:[#allocation2 + $0x168] sm:$0xff]
    %v819 = vld [vmem:[#allocation2 + $0x170] sm:$0xff]
    %v820 = vld [vmem:[#allocation2 + $0x178] sm:$0xff]
    %v821 = vld [vmem:[#allocation2 + $0x180] sm:$0xff]
    %v822 = vld [vmem:[#allocation2 + $0x188] sm:$0xff]
    %v823 = vld [vmem:[#allocation2 + $0x190] sm:$0xff]
    %v824 = vld [vmem:[#allocation2 + $0x198] sm:$0xff]
    %v825 = vld [vmem:[#allocation2 + $0x1a0] sm:$0xff]
    %v826 = vld [vmem:[#allocation2 + $0x1a8] sm:$0xff]
    %v827 = vld [vmem:[#allocation2 + $0x1b0] sm:$0xff]
    %v828 = vld [vmem:[#allocation2 + $0x1b8] sm:$0xff]
    %v829 = vld [vmem:[#allocation2 + $0x1c0] sm:$0xff]
    %v830 = vld [vmem:[#allocation2 + $0x1c8] sm:$0xff]
    %v831 = vld [vmem:[#allocation2 + $0x1d0] sm:$0xff]
    %v832 = vld [vmem:[#allocation2 + $0x1d8] sm:$0xff]
    %v833 = vld [vmem:[#allocation2 + $0x1e0] sm:$0xff]
    %v834 = vld [vmem:[#allocation2 + $0x1e8] sm:$0xff]
    %v835 = vld [vmem:[#allocation2 + $0x1f0] sm:$0xff]
    %v836 = vld [vmem:[#allocation2 + $0x1f8] sm:$0xff]
    %v837 = vpack.c.bf16 %v773, %v773
    %v838 = vpack.c.bf16 %v774, %v774
    %v839 = vpack.c.bf16 %v775, %v775
    %v840 = vpack.c.bf16 %v776, %v776
    %v841 = vpack.c.bf16 %v777, %v777
    %v842 = vpack.c.bf16 %v778, %v778
    %v843 = vpack.c.bf16 %v779, %v779
    %v844 = vpack.c.bf16 %v780, %v780
    %v845 = vpack.c.bf16 %v781, %v781
    %v846 = vpack.c.bf16 %v782, %v782
    %v847 = vpack.c.bf16 %v783, %v783
    %v848 = vpack.c.bf16 %v784, %v784
    %v849 = vpack.c.bf16 %v785, %v785
    %v850 = vpack.c.bf16 %v786, %v786
    %v851 = vpack.c.bf16 %v787, %v787
    %v852 = vpack.c.bf16 %v788, %v788
    %v853 = vpack.c.bf16 %v789, %v789
    %v854 = vpack.c.bf16 %v790, %v790
    %v855 = vpack.c.bf16 %v791, %v791
    %v856 = vpack.c.bf16 %v792, %v792
    %v857 = vpack.c.bf16 %v793, %v793
    %v858 = vpack.c.bf16 %v794, %v794
    %v859 = vpack.c.bf16 %v795, %v795
    %v860 = vpack.c.bf16 %v796, %v796
    %v861 = vpack.c.bf16 %v797, %v797
    %v862 = vpack.c.bf16 %v798, %v798
    %v863 = vpack.c.bf16 %v799, %v799
    %v864 = vpack.c.bf16 %v800, %v800
    %v865 = vpack.c.bf16 %v801, %v801
    %v866 = vpack.c.bf16 %v802, %v802
    %v867 = vpack.c.bf16 %v803, %v803
    %v868 = vpack.c.bf16 %v804, %v804
    %v869 = vpack.c.bf16 %v805, %v805
    %v870 = vpack.c.bf16 %v806, %v806
    %v871 = vpack.c.bf16 %v807, %v807
    %v872 = vpack.c.bf16 %v808, %v808
    %v873 = vpack.c.bf16 %v809, %v809
    %v874 = vpack.c.bf16 %v810, %v810
    %v875 = vpack.c.bf16 %v811, %v811
    %v876 = vpack.c.bf16 %v812, %v812
    %v877 = vpack.c.bf16 %v813, %v813
    %v878 = vpack.c.bf16 %v814, %v814
    %v879 = vpack.c.bf16 %v815, %v815
    %v880 = vpack.c.bf16 %v816, %v816
    %v881 = vpack.c.bf16 %v817, %v817
    %v882 = vpack.c.bf16 %v818, %v818
    %v883 = vpack.c.bf16 %v819, %v819
    %v884 = vpack.c.bf16 %v820, %v820
    %v885 = vpack.c.bf16 %v821, %v821
    %v886 = vpack.c.bf16 %v822, %v822
    %v887 = vpack.c.bf16 %v823, %v823
    %v888 = vpack.c.bf16 %v824, %v824
    %v889 = vpack.c.bf16 %v825, %v825
    %v890 = vpack.c.bf16 %v826, %v826
    %v891 = vpack.c.bf16 %v827, %v827
    %v892 = vpack.c.bf16 %v828, %v828
    %v893 = vpack.c.bf16 %v829, %v829
    %v894 = vpack.c.bf16 %v830, %v830
    %v895 = vpack.c.bf16 %v831, %v831
    %v896 = vpack.c.bf16 %v832, %v832
    %v897 = vpack.c.bf16 %v833, %v833
    %v898 = vpack.c.bf16 %v834, %v834
    %v899 = vpack.c.bf16 %v835, %v835
    %v900 = vpack.c.bf16 %v836, %v836
    %901 = vst [vmem:[%s2] sm:$0xf] %v837
    %902 = vst [vmem:[%s2 + $0x4] sm:$0xf] %v838
    %903 = vst [vmem:[%s2 + $0x8] sm:$0xf] %v839
    %904 = vst [vmem:[%s2 + $0xc] sm:$0xf] %v840
    %905 = vst [vmem:[%s2 + $0x10] sm:$0xf] %v841
    %906 = vst [vmem:[%s2 + $0x14] sm:$0xf] %v842
    %907 = vst [vmem:[%s2 + $0x18] sm:$0xf] %v843
    %908 = vst [vmem:[%s2 + $0x1c] sm:$0xf] %v844
    %909 = vst [vmem:[%s2 + $0x20] sm:$0xf] %v845
    %910 = vst [vmem:[%s2 + $0x24] sm:$0xf] %v846
    %911 = vst [vmem:[%s2 + $0x28] sm:$0xf] %v847
    %912 = vst [vmem:[%s2 + $0x2c] sm:$0xf] %v848
    %913 = vst [vmem:[%s2 + $0x30] sm:$0xf] %v849
    %914 = vst [vmem:[%s2 + $0x34] sm:$0xf] %v850
    %915 = vst [vmem:[%s2 + $0x38] sm:$0xf] %v851
    %916 = vst [vmem:[%s2 + $0x3c] sm:$0xf] %v852
    %917 = vst [vmem:[%s2 + $0x40] sm:$0xf] %v853
    %918 = vst [vmem:[%s2 + $0x44] sm:$0xf] %v854
    %919 = vst [vmem:[%s2 + $0x48] sm:$0xf] %v855
    %920 = vst [vmem:[%s2 + $0x4c] sm:$0xf] %v856
    %921 = vst [vmem:[%s2 + $0x50] sm:$0xf] %v857
    %922 = vst [vmem:[%s2 + $0x54] sm:$0xf] %v858
    %923 = vst [vmem:[%s2 + $0x58] sm:$0xf] %v859
    %924 = vst [vmem:[%s2 + $0x5c] sm:$0xf] %v860
    %925 = vst [vmem:[%s2 + $0x60] sm:$0xf] %v861
    %926 = vst [vmem:[%s2 + $0x64] sm:$0xf] %v862
    %927 = vst [vmem:[%s2 + $0x68] sm:$0xf] %v863
    %928 = vst [vmem:[%s2 + $0x6c] sm:$0xf] %v864
    %929 = vst [vmem:[%s2 + $0x70] sm:$0xf] %v865
    %930 = vst [vmem:[%s2 + $0x74] sm:$0xf] %v866
    %931 = vst [vmem:[%s2 + $0x78] sm:$0xf] %v867
    %932 = vst [vmem:[%s2 + $0x7c] sm:$0xf] %v868
    %933 = vst [vmem:[%s2 + $0x80] sm:$0xf] %v869
    %934 = vst [vmem:[%s2 + $0x84] sm:$0xf] %v870
    %935 = vst [vmem:[%s2 + $0x88] sm:$0xf] %v871
    %936 = vst [vmem:[%s2 + $0x8c] sm:$0xf] %v872
    %937 = vst [vmem:[%s2 + $0x90] sm:$0xf] %v873
    %938 = vst [vmem:[%s2 + $0x94] sm:$0xf] %v874
    %939 = vst [vmem:[%s2 + $0x98] sm:$0xf] %v875
    %940 = vst [vmem:[%s2 + $0x9c] sm:$0xf] %v876
    %941 = vst [vmem:[%s2 + $0xa0] sm:$0xf] %v877
    %942 = vst [vmem:[%s2 + $0xa4] sm:$0xf] %v878
    %943 = vst [vmem:[%s2 + $0xa8] sm:$0xf] %v879
    %944 = vst [vmem:[%s2 + $0xac] sm:$0xf] %v880
    %945 = vst [vmem:[%s2 + $0xb0] sm:$0xf] %v881
    %946 = vst [vmem:[%s2 + $0xb4] sm:$0xf] %v882
    %947 = vst [vmem:[%s2 + $0xb8] sm:$0xf] %v883
    %948 = vst [vmem:[%s2 + $0xbc] sm:$0xf] %v884
    %949 = vst [vmem:[%s2 + $0xc0] sm:$0xf] %v885
    %950 = vst [vmem:[%s2 + $0xc4] sm:$0xf] %v886
    %951 = vst [vmem:[%s2 + $0xc8] sm:$0xf] %v887
    %952 = vst [vmem:[%s2 + $0xcc] sm:$0xf] %v888
    %953 = vst [vmem:[%s2 + $0xd0] sm:$0xf] %v889
    %954 = vst [vmem:[%s2 + $0xd4] sm:$0xf] %v890
    %955 = vst [vmem:[%s2 + $0xd8] sm:$0xf] %v891
    %956 = vst [vmem:[%s2 + $0xdc] sm:$0xf] %v892
    %957 = vst [vmem:[%s2 + $0xe0] sm:$0xf] %v893
    %958 = vst [vmem:[%s2 + $0xe4] sm:$0xf] %v894
    %959 = vst [vmem:[%s2 + $0xe8] sm:$0xf] %v895
    %960 = vst [vmem:[%s2 + $0xec] sm:$0xf] %v896
    %961 = vst [vmem:[%s2 + $0xf0] sm:$0xf] %v897
    %962 = vst [vmem:[%s2 + $0xf4] sm:$0xf] %v898
    %963 = vst [vmem:[%s2 + $0xf8] sm:$0xf] %v899
    %964 = vst [vmem:[%s2 + $0xfc] sm:$0xf] %v900
    %v965 = vld [vmem:[%s3] sm:$0x1]
    %v966 = vadd.f32 %v773, %v774
    %v967 = vadd.f32 %v966, %v775
    %v968 = vadd.f32 %v967, %v776
    %v969 = vadd.f32 %v968, %v777
    %v970 = vadd.f32 %v969, %v778
    %v971 = vadd.f32 %v970, %v779
    %v972 = vadd.f32 %v971, %v780
    %v973 = vadd.f32 %v972, %v781
    %v974 = vadd.f32 %v973, %v782
    %v975 = vadd.f32 %v974, %v783
    %v976 = vadd.f32 %v975, %v784
    %v977 = vadd.f32 %v976, %v785
    %v978 = vadd.f32 %v977, %v786
    %v979 = vadd.f32 %v978, %v787
    %v980 = vadd.f32 %v979, %v788
    %v981 = vadd.f32 %v980, %v789
    %v982 = vadd.f32 %v981, %v790
    %v983 = vadd.f32 %v982, %v791
    %v984 = vadd.f32 %v983, %v792
    %v985 = vadd.f32 %v984, %v793
    %v986 = vadd.f32 %v985, %v794
    %v987 = vadd.f32 %v986, %v795
    %v988 = vadd.f32 %v987, %v796
    %v989 = vadd.f32 %v988, %v797
    %v990 = vadd.f32 %v989, %v798
    %v991 = vadd.f32 %v990, %v799
    %v992 = vadd.f32 %v991, %v800
    %v993 = vadd.f32 %v992, %v801
    %v994 = vadd.f32 %v993, %v802
    %v995 = vadd.f32 %v994, %v803
    %v996 = vadd.f32 %v995, %v804
    %v997 = vadd.f32 %v996, %v805
    %v998 = vadd.f32 %v997, %v806
    %v999 = vadd.f32 %v998, %v807
    %v1000 = vadd.f32 %v999, %v808
    %v1001 = vadd.f32 %v1000, %v809
    %v1002 = vadd.f32 %v1001, %v810
    %v1003 = vadd.f32 %v1002, %v811
    %v1004 = vadd.f32 %v1003, %v812
    %v1005 = vadd.f32 %v1004, %v813
    %v1006 = vadd.f32 %v1005, %v814
    %v1007 = vadd.f32 %v1006, %v815
    %v1008 = vadd.f32 %v1007, %v816
    %v1009 = vadd.f32 %v1008, %v817
    %v1010 = vadd.f32 %v1009, %v818
    %v1011 = vadd.f32 %v1010, %v819
    %v1012 = vadd.f32 %v1011, %v820
    %v1013 = vadd.f32 %v1012, %v821
    %v1014 = vadd.f32 %v1013, %v822
    %v1015 = vadd.f32 %v1014, %v823
    %v1016 = vadd.f32 %v1015, %v824
    %v1017 = vadd.f32 %v1016, %v825
    %v1018 = vadd.f32 %v1017, %v826
    %v1019 = vadd.f32 %v1018, %v827
    %v1020 = vadd.f32 %v1019, %v828
    %v1021 = vadd.f32 %v1020, %v829
    %v1022 = vadd.f32 %v1021, %v830
    %v1023 = vadd.f32 %v1022, %v831
    %v1024 = vadd.f32 %v1023, %v832
    %v1025 = vadd.f32 %v1024, %v833
    %v1026 = vadd.f32 %v1025, %v834
    %v1027 = vadd.f32 %v1026, %v835
    %v1028 = vadd.f32 %v1027, %v836
    %v1029 = vrot.slane %v1028, 4
    %v1030 = vadd.f32 %v1028, %v1029
    %v1031 = vrot.slane %v1030, 2
    %v1032 = vadd.f32 %v1030, %v1031
    %v1033 = vrot.slane %v1032, 1
    %v1034 = vadd.f32 %v1032, %v1033
    %v1035 = vadd.f32 %v965, %v1034
    %1036 = vst [vmem:[%s3] sm:$0x1] %v1035
    %v1037 = vld [vmem:[%s4] sm:$0x1]
    %v1038 = vmul.f32 %v773, %v773
    %v1039 = vmul.f32 %v774, %v774
    %v1040 = vmul.f32 %v775, %v775
    %v1041 = vmul.f32 %v776, %v776
    %v1042 = vmul.f32 %v777, %v777
    %v1043 = vmul.f32 %v778, %v778
    %v1044 = vmul.f32 %v779, %v779
    %v1045 = vmul.f32 %v780, %v780
    %v1046 = vmul.f32 %v781, %v781
    %v1047 = vmul.f32 %v782, %v782
    %v1048 = vmul.f32 %v783, %v783
    %v1049 = vmul.f32 %v784, %v784
    %v1050 = vmul.f32 %v785, %v785
    %v1051 = vmul.f32 %v786, %v786
    %v1052 = vmul.f32 %v787, %v787
    %v1053 = vmul.f32 %v788, %v788
    %v1054 = vmul.f32 %v789, %v789
    %v1055 = vmul.f32 %v790, %v790
    %v1056 = vmul.f32 %v791, %v791
    %v1057 = vmul.f32 %v792, %v792
    %v1058 = vmul.f32 %v793, %v793
    %v1059 = vmul.f32 %v794, %v794
    %v1060 = vmul.f32 %v795, %v795
    %v1061 = vmul.f32 %v796, %v796
    %v1062 = vmul.f32 %v797, %v797
    %v1063 = vmul.f32 %v798, %v798
    %v1064 = vmul.f32 %v799, %v799
    %v1065 = vmul.f32 %v800, %v800
    %v1066 = vmul.f32 %v801, %v801
    %v1067 = vmul.f32 %v802, %v802
    %v1068 = vmul.f32 %v803, %v803
    %v1069 = vmul.f32 %v804, %v804
    %v1070 = vmul.f32 %v805, %v805
    %v1071 = vmul.f32 %v806, %v806
    %v1072 = vmul.f32 %v807, %v807
    %v1073 = vmul.f32 %v808, %v808
    %v1074 = vmul.f32 %v809, %v809
    %v1075 = vmul.f32 %v810, %v810
    %v1076 = vmul.f32 %v811, %v811
    %v1077 = vmul.f32 %v812, %v812
    %v1078 = vmul.f32 %v813, %v813
    %v1079 = vmul.f32 %v814, %v814
    %v1080 = vmul.f32 %v815, %v815
    %v1081 = vmul.f32 %v816, %v816
    %v1082 = vmul.f32 %v817, %v817
    %v1083 = vmul.f32 %v818, %v818
    %v1084 = vmul.f32 %v819, %v819
    %v1085 = vmul.f32 %v820, %v820
    %v1086 = vmul.f32 %v821, %v821
    %v1087 = vmul.f32 %v822, %v822
    %v1088 = vmul.f32 %v823, %v823
    %v1089 = vmul.f32 %v824, %v824
    %v1090 = vmul.f32 %v825, %v825
    %v1091 = vmul.f32 %v826, %v826
    %v1092 = vmul.f32 %v827, %v827
    %v1093 = vmul.f32 %v828, %v828
    %v1094 = vmul.f32 %v829, %v829
    %v1095 = vmul.f32 %v830, %v830
    %v1096 = vmul.f32 %v831, %v831
    %v1097 = vmul.f32 %v832, %v832
    %v1098 = vmul.f32 %v833, %v833
    %v1099 = vmul.f32 %v834, %v834
    %v1100 = vmul.f32 %v835, %v835
    %v1101 = vmul.f32 %v836, %v836
    %v1102 = vadd.f32 %v1038, %v1039
    %v1103 = vadd.f32 %v1102, %v1040
    %v1104 = vadd.f32 %v1103, %v1041
    %v1105 = vadd.f32 %v1104, %v1042
    %v1106 = vadd.f32 %v1105, %v1043
    %v1107 = vadd.f32 %v1106, %v1044
    %v1108 = vadd.f32 %v1107, %v1045
    %v1109 = vadd.f32 %v1108, %v1046
    %v1110 = vadd.f32 %v1109, %v1047
    %v1111 = vadd.f32 %v1110, %v1048
    %v1112 = vadd.f32 %v1111, %v1049
    %v1113 = vadd.f32 %v1112, %v1050
    %v1114 = vadd.f32 %v1113, %v1051
    %v1115 = vadd.f32 %v1114, %v1052
    %v1116 = vadd.f32 %v1115, %v1053
    %v1117 = vadd.f32 %v1116, %v1054
    %v1118 = vadd.f32 %v1117, %v1055
    %v1119 = vadd.f32 %v1118, %v1056
    %v1120 = vadd.f32 %v1119, %v1057
    %v1121 = vadd.f32 %v1120, %v1058
    %v1122 = vadd.f32 %v1121, %v1059
    %v1123 = vadd.f32 %v1122, %v1060
    %v1124 = vadd.f32 %v1123, %v1061
    %v1125 = vadd.f32 %v1124, %v1062
    %v1126 = vadd.f32 %v1125, %v1063
    %v1127 = vadd.f32 %v1126, %v1064
    %v1128 = vadd.f32 %v1127, %v1065
    %v1129 = vadd.f32 %v1128, %v1066
    %v1130 = vadd.f32 %v1129, %v1067
    %v1131 = vadd.f32 %v1130, %v1068
    %v1132 = vadd.f32 %v1131, %v1069
    %v1133 = vadd.f32 %v1132, %v1070
    %v1134 = vadd.f32 %v1133, %v1071
    %v1135 = vadd.f32 %v1134, %v1072
    %v1136 = vadd.f32 %v1135, %v1073
    %v1137 = vadd.f32 %v1136, %v1074
    %v1138 = vadd.f32 %v1137, %v1075
    %v1139 = vadd.f32 %v1138, %v1076
    %v1140 = vadd.f32 %v1139, %v1077
    %v1141 = vadd.f32 %v1140, %v1078
    %v1142 = vadd.f32 %v1141, %v1079
    %v1143 = vadd.f32 %v1142, %v1080
    %v1144 = vadd.f32 %v1143, %v1081
    %v1145 = vadd.f32 %v1144, %v1082
    %v1146 = vadd.f32 %v1145, %v1083
    %v1147 = vadd.f32 %v1146, %v1084
    %v1148 = vadd.f32 %v1147, %v1085
    %v1149 = vadd.f32 %v1148, %v1086
    %v1150 = vadd.f32 %v1149, %v1087
    %v1151 = vadd.f32 %v1150, %v1088
    %v1152 = vadd.f32 %v1151, %v1089
    %v1153 = vadd.f32 %v1152, %v1090
    %v1154 = vadd.f32 %v1153, %v1091
    %v1155 = vadd.f32 %v1154, %v1092
    %v1156 = vadd.f32 %v1155, %v1093
    %v1157 = vadd.f32 %v1156, %v1094
    %v1158 = vadd.f32 %v1157, %v1095
    %v1159 = vadd.f32 %v1158, %v1096
    %v1160 = vadd.f32 %v1159, %v1097
    %v1161 = vadd.f32 %v1160, %v1098
    %v1162 = vadd.f32 %v1161, %v1099
    %v1163 = vadd.f32 %v1162, %v1100
    %v1164 = vadd.f32 %v1163, %v1101
    %v1165 = vrot.slane %v1164, 4
    %v1166 = vadd.f32 %v1164, %v1165
    %v1167 = vrot.slane %v1166, 2
    %v1168 = vadd.f32 %v1166, %v1167
    %v1169 = vrot.slane %v1168, 1
    %v1170 = vadd.f32 %v1168, %v1169
    %v1171 = vadd.f32 %v1037, %v1170
    %1172 = vst [vmem:[%s4] sm:$0x1] %v1171
  $region21: #{conv_block_forward.2} parent=0 // pred_fallthru
    _
  // Predicated region
  $region22: #{conv_block_forward.2} parent=0 // pred_check
    _
  $region23: #{conv_block_forward.2} parent=0 // pred_check_branch
    %1174 = sbr.rel (0) target = $region25
  $region24: #{conv_block_forward.2} parent=0 // pred_region
    _
  $region25: #{conv_block_forward.2} parent=0 // pred_fallthru
    _
  // Predicated region
  $region26: #{conv_block_forward.2} parent=0 // pred_check
    _
  $region27: #{conv_block_forward.2} parent=0 // pred_check_branch
    %1176 = sbr.rel (0) target = $region29
  $region28: #{conv_block_forward.2} parent=0 // pred_region
    _
  $region29: #{conv_block_forward.2} parent=0 // pred_fallthru
    _
  // Predicated region
  $region30: #{conv_block_forward.2} parent=0 // pred_check
    _
  $region31: #{conv_block_forward.2} parent=0 // pred_check_branch
    %1178 = sbr.rel (0) target = $region33
  $region32: #{conv_block_forward.2} parent=0 // pred_region
    _
  $region33: #{conv_block_forward.2} parent=0 // pred_fallthru
    _
  // Predicated region
  $region34: #{conv_block_forward.2} parent=0 // pred_check
    _
  $region35: #{conv_block_forward.2} parent=0 // pred_check_branch
    %1180 = sbr.rel (0) target = $region37
  $region36: #{conv_block_forward.2} parent=0 // pred_region
    _
  $region37: #{conv_block_forward.2} parent=0 // pred_fallthru
    _
  // Predicated region
  $region38: #{conv_block_forward.2} parent=0 // pred_check
    _
  $region39: #{conv_block_forward.2} parent=0 // pred_check_branch
    %1182 = sbr.rel (0) target = $region41
  $region40: #{conv_block_forward.2} parent=0 // pred_region
    _
  $region41: #{conv_block_forward.2} parent=0 // pred_fallthru
    _
  // Predicated region
  $region42: #{conv_block_forward.2} parent=0 // pred_check
    _
  $region43: #{conv_block_forward.2} parent=0 // pred_check_branch
    %1184 = sbr.rel (0) target = $region45
  $region44: #{conv_block_forward.2} parent=0 // pred_region
    _
  $region45: #{conv_block_forward.2} parent=0 // pred_fallthru
    _

</llo_original>
